<compile_context>
chip_gen: v7x
topology: tpu7x:2x2x1
jax: 0.10.0
libtpu: 0.0.40
codegen_flags: <defaults>
</compile_context>

<pallas_src>
import functools

import jax
import jax.numpy as jnp
from jax import lax
from jax.experimental import pallas as pl
from jax.experimental.pallas import tpu as pltpu

_BN_EPS = 1e-5
_LANES = 128


def _squeezed():
    # pl.Squeezed() on recent jax; `None` (same semantics) on older releases.
    return pl.Squeezed() if hasattr(pl, "Squeezed") else None


def _round_up(x, m):
    return ((x + m - 1) // m) * m


# ----------------------------------------------------------------------------
# Fused kernel: one (batch, output-row-tile) grid step computes
#   expand 1x1 -> +b1 -> ReLU6 -> 3x3 depthwise -> +b2 -> ReLU6
#   -> project 1x1 -> +b3 (-> + residual)
# ----------------------------------------------------------------------------
def _fused_ir_kernel(*refs, stride, th, use_res, has_expand):
    if has_expand:
        (x_ref, we_ref, b1_ref, wd_ref, b2_ref, wp_ref, b3_ref, o_ref) = refs[:8]
        scratch = refs[8:]
    else:
        (x_ref, wd_ref, b2_ref, wp_ref, b3_ref, o_ref) = refs[:6]
        scratch = refs[6:]

    t = pl.program_id(1)
    H, W, cin = x_ref.shape                  # whole image for this batch element
    wo = o_ref.shape[1]
    oup = o_ref.shape[2]
    hdp = wd_ref.shape[-1]                   # lane-padded hidden dim

    n_core = (th - 1) * stride + 1           # input rows that are always in-range
    core_start = pl.multiple_of(t * (th * stride), th * stride)
    r_top = core_start - 1                   # global row of the top halo
    r_bot = core_start + n_core              # global row of the bottom halo

    def hidden(xrows):
        """expand 1x1 (bf16 MXU) + bias + ReLU6 on a block of input rows."""
        r = xrows.shape[0]
        if has_expand:
            h = jnp.dot(xrows.reshape(r * W, cin).astype(jnp.bfloat16),
                        we_ref[...], preferred_element_type=jnp.float32)
            h = jnp.clip(h + b1_ref[...], 0.0, 6.0)
            return h.reshape(r, W, hdp)
        return xrows.astype(jnp.float32)

    # Core rows + the two 1-row halos computed separately (no window concat).
    x_core = x_ref[pl.ds(core_start, n_core), :, :]
    h_core = hidden(x_core)
    # Halo rows: clamp the row index, compute, and scale by an in-range
    # indicator.  This realizes the 3x3 conv's zero row padding with ~1 row of
    # VALU work instead of a full-window mask multiply.
    top_in = (r_top >= 0).astype(jnp.float32)
    bot_in = (r_bot <= H - 1).astype(jnp.float32)
    h_top = hidden(x_ref[pl.ds(jnp.maximum(r_top, 0), 1), :, :]) * top_in
    h_bot = hidden(x_ref[pl.ds(jnp.minimum(r_bot, H - 1), 1), :, :]) * bot_in

    wd = wd_ref[...]                         # (3, 3, hdp), s2 already folded in
    acc = None

    if stride == 1:
        # Padded-width scratch; zero side columns rewritten each step because
        # scratch persists per-core (uninitialized / unknown step order under
        # "parallel" semantics).  They are two 1-wide stores -> negligible.
        (hid_ref,) = scratch                 # (th + 2, W + 2, hdp)
        zcol = jnp.zeros((th + 2, 1, hdp), jnp.float32)
        hid_ref[:, pl.ds(0, 1), :] = zcol
        hid_ref[:, pl.ds(W + 1, 1), :] = zcol
        hid_ref[pl.ds(0, 1), pl.ds(1, W), :] = h_top
        hid_ref[pl.ds(1, n_core), pl.ds(1, W), :] = h_core
        hid_ref[pl.ds(th + 1, 1), pl.ds(1, W), :] = h_bot

        for dy in range(3):
            for dx in range(3):
                tap = hid_ref[pl.ds(dy, th), pl.ds(dx, wo), :]
                term = tap * wd[dy:dy + 1, dx:dx + 1, :]
                acc = term if acc is None else acc + term
    else:
        # stride == 2: de-interleave rows/columns by parity at staging time so
        # every tap below is a contiguous scratch read.
        #   s_r{e,o}_c{e,o}: window-row parity (even/odd) x PADDED-col parity.
        s_re_ce, s_re_co, s_ro_ce, s_ro_co = scratch
        wh = W // 2                          # number of odd input columns
        z_e = jnp.zeros((th + 1, 1, hdp), jnp.float32)
        z_o = jnp.zeros((th, 1, hdp), jnp.float32)
        s_re_ce[:, pl.ds(0, 1), :] = z_e     # padded col 0 is the left zero pad
        s_ro_ce[:, pl.ds(0, 1), :] = z_o
        if W % 2 == 1:                       # padded col 2*wo is the right pad
            s_re_ce[:, pl.ds(wo, 1), :] = z_e
            s_ro_ce[:, pl.ds(wo, 1), :] = z_o

        def col_split(h):
            r = h.shape[0]
            # even input cols -> odd padded cols; odd input cols -> even padded
            ip_even = lax.slice(h, (0, 0, 0), (r, W, hdp), (1, 2, 1))  # (r, wo, hdp)
            ip_odd = lax.slice(h, (0, 1, 0), (r, W, hdp), (1, 2, 1))   # (r, wh, hdp)
            return ip_even, ip_odd

        # Halos are window rows 0 and 2*th (both even parity).
        te_, to_ = col_split(h_top)
        be_, bo_ = col_split(h_bot)
        s_re_co[pl.ds(0, 1), :, :] = te_
        s_re_co[pl.ds(th, 1), :, :] = be_
        if wh > 0:
            s_re_ce[pl.ds(0, 1), pl.ds(1, wh), :] = to_
            s_re_ce[pl.ds(th, 1), pl.ds(1, wh), :] = bo_

        # Core rows are window rows 1 .. 2*th-1.
        c_wodd = lax.slice(h_core, (0, 0, 0), (n_core, W, hdp), (2, 1, 1))  # th rows
        ce_, co_ = col_split(c_wodd)
        s_ro_co[...] = ce_
        if wh > 0:
            s_ro_ce[:, pl.ds(1, wh), :] = co_
        if th > 1:
            c_weven = lax.slice(h_core, (1, 0, 0), (n_core, W, hdp), (2, 1, 1))  # th-1
            ee_, eo_ = col_split(c_weven)
            s_re_co[pl.ds(1, th - 1), :, :] = ee_
            if wh > 0:
                s_re_ce[pl.ds(1, th - 1), pl.ds(1, wh), :] = eo_

        ce_by_dy = (s_re_ce, s_ro_ce, s_re_ce)
        co_by_dy = (s_re_co, s_ro_co, s_re_co)
        roff = (0, 0, 1)
        for dy in range(3):
            for dx in range(3):
                if dx == 1:
                    tap = co_by_dy[dy][pl.ds(roff[dy], th), pl.ds(0, wo), :]
                else:
                    tap = ce_by_dy[dy][pl.ds(roff[dy], th), pl.ds(dx // 2, wo), :]
                term = tap * wd[dy:dy + 1, dx:dx + 1, :]
                acc = term if acc is None else acc + term

    # BN2 bias + ReLU6, project 1x1 (bf16 MXU) + BN3 bias (+ residual).
    y = jnp.clip(acc.reshape(th * wo, hdp) + b2_ref[...], 0.0, 6.0)
    out = jnp.dot(y.astype(jnp.bfloat16), wp_ref[...],
                  preferred_element_type=jnp.float32)
    out = out + b3_ref[...]
    if use_res:
        out = out + x_core.astype(jnp.float32).reshape(th * wo, oup)
    o_ref[...] = out.reshape(th, wo, oup).astype(o_ref.dtype)


# ----------------------------------------------------------------------------
# Wrapper
# ----------------------------------------------------------------------------
def _pick_tile_rows(ho, wo, target_m=1024):
    """Largest divisor of ho with th*wo roughly <= target_m (project matmul M)."""
    cap = max(1, min(ho, max(1, target_m // max(wo, 1))))
    for cand in range(cap, 0, -1):
        if ho % cand == 0:
            return cand
    return 1


def _pick_vmem_limit():
    cap = 64 * 1024 * 1024
    try:
        cap = int(pltpu.get_tpu_info().vmem_capacity_bytes)
    except Exception:
        pass
    # ~96 MiB on v5e/v6e (128 MiB physical), ~48 MiB on v7x (64 MiB per TC).
    return max(32 * 1024 * 1024, min(cap * 3 // 4, 96 * 1024 * 1024))


def _fold_bn(bn):
    gamma, beta, mean, var = bn
    scale = gamma / jnp.sqrt(var + _BN_EPS)
    bias = beta - mean * scale
    return scale, bias


def inverted_residual_forward(x_nchw, params, *, inp, oup, stride, expand_ratio,
                              tile_rows=None):
    """Fused InvertedResidual forward (inference). x is NCHW like PyTorch."""
    assert stride in (1, 2)
    n, c, h, w = x_nchw.shape
    assert c == inp
    hd = params["hidden"]
    has_expand = expand_ratio != 1
    use_res = (stride == 1) and (inp == oup)
    ho = (h - 1) // stride + 1               # k=3, pad=1
    wo = (w - 1) // stride + 1
    th = _pick_tile_rows(ho, wo) if tile_rows is None else tile_rows
    assert ho % th == 0, f"tile_rows={th} must divide output height {ho}"
    # Lane-pad the hidden dim to a multiple of 128: the hidden lives only in
    # VMEM, so this is free in HBM traffic and (for hd<128) in vregs/VALU,
    # while making the hidden stores/loads lane-dense.
    hdp = _round_up(hd, _LANES) if has_expand else hd
    pad_h = hdp - hd

    # TODO(synk): for a chain of blocks keep NHWC end-to-end and transpose once
    # at the network boundary instead of per block.
    x = jnp.transpose(x_nchw, (0, 2, 3, 1))  # NCHW -> NHWC

    # Fold BN scales into the conv weights (biases stay separate); cast the two
    # 1x1 matmul weights to bf16 for the MXU; zero-pad hidden dim to hdp.
    s2, b2 = _fold_bn(params["bn2"])
    s3, b3 = _fold_bn(params["bn3"])
    w_dw = jnp.pad(params["w_dw"] * s2[None, None, :],
                   ((0, 0), (0, 0), (0, pad_h)))
    b2p = jnp.pad(b2, (0, pad_h)).reshape(1, hdp)
    w_proj = jnp.pad(params["w_proj"] * s3[None, :],
                     ((0, pad_h), (0, 0))).astype(jnp.bfloat16)
    b3p = b3.reshape(1, oup)

    sq = _squeezed()
    inputs = [x]
    in_specs = [pl.BlockSpec((sq, h, w, inp), lambda b, t: (b, 0, 0, 0))]
    if has_expand:
        s1, b1 = _fold_bn(params["bn1"])
        we = jnp.pad(params["w_expand"] * s1[None, :],
                     ((0, 0), (0, pad_h))).astype(jnp.bfloat16)
        b1p = jnp.pad(b1, (0, pad_h)).reshape(1, hdp)
        inputs += [we, b1p]
        in_specs += [pl.BlockSpec((inp, hdp), lambda b, t: (0, 0)),
                     pl.BlockSpec((1, hdp), lambda b, t: (0, 0))]
    inputs += [w_dw, b2p, w_proj, b3p]
    in_specs += [
        pl.BlockSpec((3, 3, hdp), lambda b, t: (0, 0, 0)),
        pl.BlockSpec((1, hdp), lambda b, t: (0, 0)),
        pl.BlockSpec((hdp, oup), lambda b, t: (0, 0)),
        pl.BlockSpec((1, oup), lambda b, t: (0, 0)),
    ]
    out_spec = pl.BlockSpec((sq, th, wo, oup), lambda b, t: (b, t, 0, 0))

    if stride == 1:
        scratch = [pltpu.VMEM((th + 2, w + 2, hdp), jnp.float32)]
    else:
        scratch = [pltpu.VMEM((th + 1, wo + 1, hdp), jnp.float32),
                   pltpu.VMEM((th + 1, wo, hdp), jnp.float32),
                   pltpu.VMEM((th, wo + 1, hdp), jnp.float32),
                   pltpu.VMEM((th, wo, hdp), jnp.float32)]

    flops = 2 * n * ho * wo * hd * (9 + oup)
    if has_expand:
        flops += 2 * n * h * w * inp * hd
    bytes_accessed = (x.size * x.dtype.itemsize + n * ho * wo * oup * 4
                      + (inp * hdp * 2 if has_expand else 0)
                      + 9 * hdp * 4 + hdp * oup * 2 + 8 * hdp + 4 * oup)

    kern = functools.partial(_fused_ir_kernel, stride=stride, th=th,
                             use_res=use_res, has_expand=has_expand)
    y = pl.pallas_call(
        kern,
        out_shape=jax.ShapeDtypeStruct((n, ho, wo, oup), x.dtype),
        grid_spec=pltpu.PrefetchScalarGridSpec(
            num_scalar_prefetch=0,
            grid=(n, ho // th),
            in_specs=in_specs,
            out_specs=out_spec,
            scratch_shapes=scratch,
        ),
        compiler_params=pltpu.CompilerParams(
            dimension_semantics=("parallel", "parallel"),
            vmem_limit_bytes=_pick_vmem_limit(),
        ),
        cost_estimate=pl.CostEstimate(flops=int(flops), transcendentals=0,
                                      bytes_accessed=int(bytes_accessed)),
    )(*inputs)
    return jnp.transpose(y, (0, 3, 1, 2))                   # NHWC -> NCHW


# ----------------------------------------------------------------------------
# Parameter init (deterministic, mirrors the nn.Module __init__ shapes)
# ----------------------------------------------------------------------------
def _bn_params(key, c):
    k = jax.random.split(key, 4)
    gamma = 1.0 + 0.1 * jax.random.normal(k[0], (c,), jnp.float32)
    beta = 0.1 * jax.random.normal(k[1], (c,), jnp.float32)
    mean = 0.05 * jax.random.normal(k[2], (c,), jnp.float32)
    var = 1.0 + 0.1 * jnp.abs(jax.random.normal(k[3], (c,), jnp.float32))
    return gamma, beta, mean, var


def init_params(key, inp, oup, expand_ratio):
    hidden = int(round(inp * expand_ratio))
    keys = jax.random.split(key, 6)
    params = {"hidden": hidden}
    if expand_ratio != 1:
        # torch Conv2d weight (hidden, inp, 1, 1) -> matmul form (inp, hidden)
        params["w_expand"] = 0.1 * jax.random.normal(keys[0], (inp, hidden), jnp.float32)
        params["bn1"] = _bn_params(keys[1], hidden)
    # torch depthwise weight (hidden, 1, 3, 3) -> (3, 3, hidden)
    params["w_dw"] = 0.1 * jax.random.normal(keys[2], (3, 3, hidden), jnp.float32)
    params["bn2"] = _bn_params(keys[3], hidden)
    # torch Conv2d weight (oup, hidden, 1, 1) -> (hidden, oup)
    params["w_proj"] = 0.1 * jax.random.normal(keys[4], (hidden, oup), jnp.float32)
    params["bn3"] = _bn_params(keys[5], oup)
    return params


# ----------------------------------------------------------------------------
# Pure-JAX reference (inference-mode BN, exact f32 matmuls) for validation
# ----------------------------------------------------------------------------
def _ref_forward(x_nchw, params, *, inp, oup, stride, expand_ratio):
    x = jnp.transpose(x_nchw, (0, 2, 3, 1)).astype(jnp.float32)
    n, h, w, _ = x.shape
    hd = params["hidden"]
    use_res = (stride == 1) and (inp == oup)
    hi = lax.Precision.HIGHEST
    if expand_ratio != 1:
        s1, b1 = _fold_bn(params["bn1"])
        hid = jnp.clip(
            jnp.einsum("nhwc,cd->nhwd", x, params["w_expand"], precision=hi) * s1 + b1,
            0.0, 6.0)
    else:
        hid = x
    hp = jnp.pad(hid, ((0, 0), (1, 1), (1, 1), (0, 0)))
    ho = (h - 1) // stride + 1
    wo = (w - 1) // stride + 1
    acc = jnp.zeros((n, ho, wo, hd), jnp.float32)
    for dy in range(3):
        for dx in range(3):
            acc = acc + hp[:, dy:dy + (ho - 1) * stride + 1:stride,
                           dx:dx + (wo - 1) * stride + 1:stride, :] * params["w_dw"][dy, dx]
    s2, b2 = _fold_bn(params["bn2"])
    y = jnp.clip(acc * s2 + b2, 0.0, 6.0)
    s3, b3 = _fold_bn(params["bn3"])
    out = jnp.einsum("nhwc,cd->nhwd", y, params["w_proj"], precision=hi) * s3 + b3
    if use_res:
        out = out + x
    return jnp.transpose(out, (0, 3, 1, 2))


# ----------------------------------------------------------------------------
if __name__ == "__main__":
    key = jax.random.PRNGKey(0)
    N, H, W = 2, 16, 16

    configs = [
        # residual path, 4 row tiles (exercises in-range halo rows)
        dict(inp=8, oup=8, stride=1, expand_ratio=2, tile_rows=4),
        # stride-2 downsample, 2 row tiles (parity staging + in-range halos)
        dict(inp=8, oup=16, stride=2, expand_ratio=2, tile_rows=4),
        # expand_ratio == 1 branch (no expand conv), default tile pick
        dict(inp=8, oup=8, stride=1, expand_ratio=1, tile_rows=None),
        # default (large) tile pick, residual path
        dict(inp=8, oup=8, stride=1, expand_ratio=2, tile_rows=None),
    ]

    for cfg in configs:
        key, k_x, k_p = jax.random.split(key, 3)
        x = jax.random.normal(k_x, (N, cfg["inp"], H, W), jnp.float32)
        params = init_params(k_p, cfg["inp"], cfg["oup"], cfg["expand_ratio"])

        out = inverted_residual_forward(
            x, params, inp=cfg["inp"], oup=cfg["oup"], stride=cfg["stride"],
            expand_ratio=cfg["expand_ratio"], tile_rows=cfg["tile_rows"])
        out = jax.block_until_ready(out)

        ho = (H - 1) // cfg["stride"] + 1
        wo = (W - 1) // cfg["stride"] + 1
        assert out.shape == (N, cfg["oup"], ho, wo)

        ref = jax.block_until_ready(_ref_forward(
            x, params, inp=cfg["inp"], oup=cfg["oup"], stride=cfg["stride"],
            expand_ratio=cfg["expand_ratio"]))
        err = float(jnp.max(jnp.abs(out - ref)))
        # The two 1x1 convs intentionally run on the bf16 MXU path, so the
        # tolerance is looser than exact-f32.
        assert err < 2e-2, f"config {cfg}: max abs err {err}"

    print("KERNEL_OK")
</pallas_src>

<mosaic_0001>
module attributes {stable_mosaic.version = 11 : i64} {
  func.func @_fused_ir_kernel(%arg0: i32, %arg1: i32, %arg2: memref<1x16x16x8xf32, #tpu.memory_space<vmem>>, %arg3: memref<8x128xbf16, #tpu.memory_space<vmem>>, %arg4: memref<1x128xf32, #tpu.memory_space<vmem>>, %arg5: memref<3x3x128xf32, #tpu.memory_space<vmem>>, %arg6: memref<1x128xf32, #tpu.memory_space<vmem>>, %arg7: memref<128x8xbf16, #tpu.memory_space<vmem>>, %arg8: memref<1x8xf32, #tpu.memory_space<vmem>>, %arg9: memref<1x4x16x8xf32, #tpu.memory_space<vmem>>, %arg10: memref<6x18x128xf32, #tpu.memory_space<vmem>>) attributes {dimension_semantics = [#tpu.dimension_semantics<parallel>, #tpu.dimension_semantics<parallel>], iteration_bounds = array<i64: 2, 4>, scalar_prefetch = 0 : i64, scratch_operands = 1 : i64, tpu.core_type = #tpu.core_type<tc>, window_params = [{transform_indices = @transform_0, window_bounds = array<i64: 1, 16, 16, 8>}, {pipeline_mode = #tpu.pipeline_mode<synchronous>, transform_indices = @transform_1, window_bounds = array<i64: 8, 128>}, {pipeline_mode = #tpu.pipeline_mode<synchronous>, transform_indices = @transform_2, window_bounds = array<i64: 1, 128>}, {pipeline_mode = #tpu.pipeline_mode<synchronous>, transform_indices = @transform_3, window_bounds = array<i64: 3, 3, 128>}, {pipeline_mode = #tpu.pipeline_mode<synchronous>, transform_indices = @transform_4, window_bounds = array<i64: 1, 128>}, {pipeline_mode = #tpu.pipeline_mode<synchronous>, transform_indices = @transform_5, window_bounds = array<i64: 128, 8>}, {pipeline_mode = #tpu.pipeline_mode<synchronous>, transform_indices = @transform_6, window_bounds = array<i64: 1, 8>}, {transform_indices = @transform_7, window_bounds = array<i64: 1, 4, 16, 8>}]} {
    %c4_i32 = arith.constant 4 : i32
    %0 = arith.muli %arg1, %c4_i32 : i32
    %1 = tpu.assume_multiple %0, 4 : i32
    %c1_i32 = arith.constant 1 : i32
    %2 = arith.subi %1, %c1_i32 : i32
    %c4_i32_0 = arith.constant 4 : i32
    %3 = arith.addi %1, %c4_i32_0 : i32
    %c0 = arith.constant 0 : index
    %4 = arith.index_cast %1 : i32 to index
    %c0_1 = arith.constant 0 : index
    %c0_2 = arith.constant 0 : index
    %5 = vector.load %arg2[%c0, %4, %c0_1, %c0_2] : memref<1x16x16x8xf32, #tpu.memory_space<vmem>>, vector<1x4x16x8xf32>
    %6 = vector.shape_cast %5 : vector<1x4x16x8xf32> to vector<4x16x8xf32>
    %7 = vector.shape_cast %6 : vector<4x16x8xf32> to vector<64x8xf32>
    %8 = arith.truncf %7 : vector<64x8xf32> to vector<64x8xbf16>
    %c0_3 = arith.constant 0 : index
    %c0_4 = arith.constant 0 : index
    %9 = vector.load %arg3[%c0_3, %c0_4] : memref<8x128xbf16, #tpu.memory_space<vmem>>, vector<8x128xbf16>
    %cst = arith.constant dense<0.000000e+00> : vector<64x128xf32>
    %10 = tpu.matmul %8, %9, %cst {dimension_numbers = #tpu.dot_dimension_numbers<[1], [0], [0], [1], [0, 0, 1, 1], [], []>} : vector<64x8xbf16>, vector<8x128xbf16>, vector<64x128xf32> -> vector<64x128xf32>
    %c0_5 = arith.constant 0 : index
    %c0_6 = arith.constant 0 : index
    %11 = vector.load %arg4[%c0_5, %c0_6] : memref<1x128xf32, #tpu.memory_space<vmem>>, vector<1x128xf32>
    %12 = vector.broadcast %11 : vector<1x128xf32> to vector<64x128xf32>
    %13 = arith.addf %10, %12 : vector<64x128xf32>
    %cst_7 = arith.constant 0.000000e+00 : f32
    %cst_8 = arith.constant 6.000000e+00 : f32
    %14 = vector.broadcast %cst_7 : f32 to vector<64x128xf32>
    %15 = arith.maximumf %14, %13 : vector<64x128xf32>
    %16 = vector.broadcast %cst_8 : f32 to vector<64x128xf32>
    %17 = arith.minimumf %16, %15 : vector<64x128xf32>
    %18 = vector.shape_cast %17 : vector<64x128xf32> to vector<4x16x128xf32>
    %c0_i32 = arith.constant 0 : i32
    %19 = arith.cmpi sge, %2, %c0_i32 : i32
    %20 = arith.extui %19 : i1 to i32
    %21 = arith.sitofp %20 : i32 to f32
    %c15_i32 = arith.constant 15 : i32
    %22 = arith.cmpi sle, %3, %c15_i32 : i32
    %23 = arith.extui %22 : i1 to i32
    %24 = arith.sitofp %23 : i32 to f32
    %c0_i32_9 = arith.constant 0 : i32
    %25 = arith.maxsi %2, %c0_i32_9 : i32
    %c0_10 = arith.constant 0 : index
    %26 = arith.index_cast %25 : i32 to index
    %c0_11 = arith.constant 0 : index
    %c0_12 = arith.constant 0 : index
    %27 = vector.load %arg2[%c0_10, %26, %c0_11, %c0_12] : memref<1x16x16x8xf32, #tpu.memory_space<vmem>>, vector<1x1x16x8xf32>
    %28 = vector.shape_cast %27 : vector<1x1x16x8xf32> to vector<1x16x8xf32>
    %29 = vector.shape_cast %28 : vector<1x16x8xf32> to vector<16x8xf32>
    %30 = arith.truncf %29 : vector<16x8xf32> to vector<16x8xbf16>
    %c0_13 = arith.constant 0 : index
    %c0_14 = arith.constant 0 : index
    %31 = vector.load %arg3[%c0_13, %c0_14] : memref<8x128xbf16, #tpu.memory_space<vmem>>, vector<8x128xbf16>
    %cst_15 = arith.constant dense<0.000000e+00> : vector<16x128xf32>
    %32 = tpu.matmul %30, %31, %cst_15 {dimension_numbers = #tpu.dot_dimension_numbers<[1], [0], [0], [1], [0, 0, 1, 1], [], []>} : vector<16x8xbf16>, vector<8x128xbf16>, vector<16x128xf32> -> vector<16x128xf32>
    %c0_16 = arith.constant 0 : index
    %c0_17 = arith.constant 0 : index
    %33 = vector.load %arg4[%c0_16, %c0_17] : memref<1x128xf32, #tpu.memory_space<vmem>>, vector<1x128xf32>
    %34 = vector.broadcast %33 : vector<1x128xf32> to vector<16x128xf32>
    %35 = arith.addf %32, %34 : vector<16x128xf32>
    %cst_18 = arith.constant 0.000000e+00 : f32
    %cst_19 = arith.constant 6.000000e+00 : f32
    %36 = vector.broadcast %cst_18 : f32 to vector<16x128xf32>
    %37 = arith.maximumf %36, %35 : vector<16x128xf32>
    %38 = vector.broadcast %cst_19 : f32 to vector<16x128xf32>
    %39 = arith.minimumf %38, %37 : vector<16x128xf32>
    %40 = vector.shape_cast %39 : vector<16x128xf32> to vector<1x16x128xf32>
    %41 = vector.broadcast %21 : f32 to vector<1x16x128xf32>
    %42 = arith.mulf %40, %41 : vector<1x16x128xf32>
    %c15_i32_20 = arith.constant 15 : i32
    %43 = arith.minsi %3, %c15_i32_20 : i32
    %c0_21 = arith.constant 0 : index
    %44 = arith.index_cast %43 : i32 to index
    %c0_22 = arith.constant 0 : index
    %c0_23 = arith.constant 0 : index
    %45 = vector.load %arg2[%c0_21, %44, %c0_22, %c0_23] : memref<1x16x16x8xf32, #tpu.memory_space<vmem>>, vector<1x1x16x8xf32>
    %46 = vector.shape_cast %45 : vector<1x1x16x8xf32> to vector<1x16x8xf32>
    %47 = vector.shape_cast %46 : vector<1x16x8xf32> to vector<16x8xf32>
    %48 = arith.truncf %47 : vector<16x8xf32> to vector<16x8xbf16>
    %c0_24 = arith.constant 0 : index
    %c0_25 = arith.constant 0 : index
    %49 = vector.load %arg3[%c0_24, %c0_25] : memref<8x128xbf16, #tpu.memory_space<vmem>>, vector<8x128xbf16>
    %cst_26 = arith.constant dense<0.000000e+00> : vector<16x128xf32>
    %50 = tpu.matmul %48, %49, %cst_26 {dimension_numbers = #tpu.dot_dimension_numbers<[1], [0], [0], [1], [0, 0, 1, 1], [], []>} : vector<16x8xbf16>, vector<8x128xbf16>, vector<16x128xf32> -> vector<16x128xf32>
    %c0_27 = arith.constant 0 : index
    %c0_28 = arith.constant 0 : index
    %51 = vector.load %arg4[%c0_27, %c0_28] : memref<1x128xf32, #tpu.memory_space<vmem>>, vector<1x128xf32>
    %52 = vector.broadcast %51 : vector<1x128xf32> to vector<16x128xf32>
    %53 = arith.addf %50, %52 : vector<16x128xf32>
    %cst_29 = arith.constant 0.000000e+00 : f32
    %cst_30 = arith.constant 6.000000e+00 : f32
    %54 = vector.broadcast %cst_29 : f32 to vector<16x128xf32>
    %55 = arith.maximumf %54, %53 : vector<16x128xf32>
    %56 = vector.broadcast %cst_30 : f32 to vector<16x128xf32>
    %57 = arith.minimumf %56, %55 : vector<16x128xf32>
    %58 = vector.shape_cast %57 : vector<16x128xf32> to vector<1x16x128xf32>
    %59 = vector.broadcast %24 : f32 to vector<1x16x128xf32>
    %60 = arith.mulf %58, %59 : vector<1x16x128xf32>
    %c0_31 = arith.constant 0 : index
    %c0_32 = arith.constant 0 : index
    %c0_33 = arith.constant 0 : index
    %61 = vector.load %arg5[%c0_31, %c0_32, %c0_33] : memref<3x3x128xf32, #tpu.memory_space<vmem>>, vector<3x3x128xf32>
    %cst_34 = arith.constant 0.000000e+00 : f32
    %62 = vector.broadcast %cst_34 : f32 to vector<6x1x128xf32>
    %c0_35 = arith.constant 0 : index
    %c0_36 = arith.constant 0 : index
    %c0_37 = arith.constant 0 : index
    %63 = vector.load %arg10[%c0_35, %c0_36, %c0_37] : memref<6x18x128xf32, #tpu.memory_space<vmem>>, vector<6x1x128xf32>
    tpu.vector_store %arg10[%c0_35, %c0_36, %c0_37], %62 {strides = array<i32>} : memref<6x18x128xf32, #tpu.memory_space<vmem>>, vector<6x1x128xf32>,
    %c0_38 = arith.constant 0 : index
    %c17 = arith.constant 17 : index
    %c0_39 = arith.constant 0 : index
    %64 = vector.load %arg10[%c0_38, %c17, %c0_39] : memref<6x18x128xf32, #tpu.memory_space<vmem>>, vector<6x1x128xf32>
    tpu.vector_store %arg10[%c0_38, %c17, %c0_39], %62 {strides = array<i32>} : memref<6x18x128xf32, #tpu.memory_space<vmem>>, vector<6x1x128xf32>,
    %c0_40 = arith.constant 0 : index
    %c1 = arith.constant 1 : index
    %c0_41 = arith.constant 0 : index
    %65 = vector.load %arg10[%c0_40, %c1, %c0_41] : memref<6x18x128xf32, #tpu.memory_space<vmem>>, vector<1x16x128xf32>
    tpu.vector_store %arg10[%c0_40, %c1, %c0_41], %42 {strides = array<i32>} : memref<6x18x128xf32, #tpu.memory_space<vmem>>, vector<1x16x128xf32>,
    %c1_42 = arith.constant 1 : index
    %c1_43 = arith.constant 1 : index
    %c0_44 = arith.constant 0 : index
    %66 = vector.load %arg10[%c1_42, %c1_43, %c0_44] : memref<6x18x128xf32, #tpu.memory_space<vmem>>, vector<4x16x128xf32>
    tpu.vector_store %arg10[%c1_42, %c1_43, %c0_44], %18 {strides = array<i32>} : memref<6x18x128xf32, #tpu.memory_space<vmem>>, vector<4x16x128xf32>,
    %c5 = arith.constant 5 : index
    %c1_45 = arith.constant 1 : index
    %c0_46 = arith.constant 0 : index
    %67 = vector.load %arg10[%c5, %c1_45, %c0_46] : memref<6x18x128xf32, #tpu.memory_space<vmem>>, vector<1x16x128xf32>
    tpu.vector_store %arg10[%c5, %c1_45, %c0_46], %60 {strides = array<i32>} : memref<6x18x128xf32, #tpu.memory_space<vmem>>, vector<1x16x128xf32>,
    %c0_47 = arith.constant 0 : index
    %c0_48 = arith.constant 0 : index
    %c0_49 = arith.constant 0 : index
    %68 = vector.load %arg10[%c0_47, %c0_48, %c0_49] : memref<6x18x128xf32, #tpu.memory_space<vmem>>, vector<4x16x128xf32>
    %69 = vector.extract_strided_slice %61 {offsets = [0, 0, 0], sizes = [1, 1, 128], strides = [1, 1, 1]} : vector<3x3x128xf32> to vector<1x1x128xf32>
    %70 = vector.broadcast %69 : vector<1x1x128xf32> to vector<4x16x128xf32>
    %71 = arith.mulf %68, %70 : vector<4x16x128xf32>
    %c0_50 = arith.constant 0 : index
    %c1_51 = arith.constant 1 : index
    %c0_52 = arith.constant 0 : index
    %72 = vector.load %arg10[%c0_50, %c1_51, %c0_52] : memref<6x18x128xf32, #tpu.memory_space<vmem>>, vector<4x16x128xf32>
    %73 = vector.extract_strided_slice %61 {offsets = [0, 1, 0], sizes = [1, 1, 128], strides = [1, 1, 1]} : vector<3x3x128xf32> to vector<1x1x128xf32>
    %74 = vector.broadcast %73 : vector<1x1x128xf32> to vector<4x16x128xf32>
    %75 = arith.mulf %72, %74 : vector<4x16x128xf32>
    %76 = arith.addf %71, %75 : vector<4x16x128xf32>
    %c0_53 = arith.constant 0 : index
    %c2 = arith.constant 2 : index
    %c0_54 = arith.constant 0 : index
    %77 = vector.load %arg10[%c0_53, %c2, %c0_54] : memref<6x18x128xf32, #tpu.memory_space<vmem>>, vector<4x16x128xf32>
    %78 = vector.extract_strided_slice %61 {offsets = [0, 2, 0], sizes = [1, 1, 128], strides = [1, 1, 1]} : vector<3x3x128xf32> to vector<1x1x128xf32>
    %79 = vector.broadcast %78 : vector<1x1x128xf32> to vector<4x16x128xf32>
    %80 = arith.mulf %77, %79 : vector<4x16x128xf32>
    %81 = arith.addf %76, %80 : vector<4x16x128xf32>
    %c1_55 = arith.constant 1 : index
    %c0_56 = arith.constant 0 : index
    %c0_57 = arith.constant 0 : index
    %82 = vector.load %arg10[%c1_55, %c0_56, %c0_57] : memref<6x18x128xf32, #tpu.memory_space<vmem>>, vector<4x16x128xf32>
    %83 = vector.extract_strided_slice %61 {offsets = [1, 0, 0], sizes = [1, 1, 128], strides = [1, 1, 1]} : vector<3x3x128xf32> to vector<1x1x128xf32>
    %84 = vector.broadcast %83 : vector<1x1x128xf32> to vector<4x16x128xf32>
    %85 = arith.mulf %82, %84 : vector<4x16x128xf32>
    %86 = arith.addf %81, %85 : vector<4x16x128xf32>
    %c1_58 = arith.constant 1 : index
    %c1_59 = arith.constant 1 : index
    %c0_60 = arith.constant 0 : index
    %87 = vector.load %arg10[%c1_58, %c1_59, %c0_60] : memref<6x18x128xf32, #tpu.memory_space<vmem>>, vector<4x16x128xf32>
    %88 = vector.extract_strided_slice %61 {offsets = [1, 1, 0], sizes = [1, 1, 128], strides = [1, 1, 1]} : vector<3x3x128xf32> to vector<1x1x128xf32>
    %89 = vector.broadcast %88 : vector<1x1x128xf32> to vector<4x16x128xf32>
    %90 = arith.mulf %87, %89 : vector<4x16x128xf32>
    %91 = arith.addf %86, %90 : vector<4x16x128xf32>
    %c1_61 = arith.constant 1 : index
    %c2_62 = arith.constant 2 : index
    %c0_63 = arith.constant 0 : index
    %92 = vector.load %arg10[%c1_61, %c2_62, %c0_63] : memref<6x18x128xf32, #tpu.memory_space<vmem>>, vector<4x16x128xf32>
    %93 = vector.extract_strided_slice %61 {offsets = [1, 2, 0], sizes = [1, 1, 128], strides = [1, 1, 1]} : vector<3x3x128xf32> to vector<1x1x128xf32>
    %94 = vector.broadcast %93 : vector<1x1x128xf32> to vector<4x16x128xf32>
    %95 = arith.mulf %92, %94 : vector<4x16x128xf32>
    %96 = arith.addf %91, %95 : vector<4x16x128xf32>
    %c2_64 = arith.constant 2 : index
    %c0_65 = arith.constant 0 : index
    %c0_66 = arith.constant 0 : index
    %97 = vector.load %arg10[%c2_64, %c0_65, %c0_66] : memref<6x18x128xf32, #tpu.memory_space<vmem>>, vector<4x16x128xf32>
    %98 = vector.extract_strided_slice %61 {offsets = [2, 0, 0], sizes = [1, 1, 128], strides = [1, 1, 1]} : vector<3x3x128xf32> to vector<1x1x128xf32>
    %99 = vector.broadcast %98 : vector<1x1x128xf32> to vector<4x16x128xf32>
    %100 = arith.mulf %97, %99 : vector<4x16x128xf32>
    %101 = arith.addf %96, %100 : vector<4x16x128xf32>
    %c2_67 = arith.constant 2 : index
    %c1_68 = arith.constant 1 : index
    %c0_69 = arith.constant 0 : index
    %102 = vector.load %arg10[%c2_67, %c1_68, %c0_69] : memref<6x18x128xf32, #tpu.memory_space<vmem>>, vector<4x16x128xf32>
    %103 = vector.extract_strided_slice %61 {offsets = [2, 1, 0], sizes = [1, 1, 128], strides = [1, 1, 1]} : vector<3x3x128xf32> to vector<1x1x128xf32>
    %104 = vector.broadcast %103 : vector<1x1x128xf32> to vector<4x16x128xf32>
    %105 = arith.mulf %102, %104 : vector<4x16x128xf32>
    %106 = arith.addf %101, %105 : vector<4x16x128xf32>
    %c2_70 = arith.constant 2 : index
    %c2_71 = arith.constant 2 : index
    %c0_72 = arith.constant 0 : index
    %107 = vector.load %arg10[%c2_70, %c2_71, %c0_72] : memref<6x18x128xf32, #tpu.memory_space<vmem>>, vector<4x16x128xf32>
    %108 = vector.extract_strided_slice %61 {offsets = [2, 2, 0], sizes = [1, 1, 128], strides = [1, 1, 1]} : vector<3x3x128xf32> to vector<1x1x128xf32>
    %109 = vector.broadcast %108 : vector<1x1x128xf32> to vector<4x16x128xf32>
    %110 = arith.mulf %107, %109 : vector<4x16x128xf32>
    %111 = arith.addf %106, %110 : vector<4x16x128xf32>
    %112 = vector.shape_cast %111 : vector<4x16x128xf32> to vector<64x128xf32>
    %c0_73 = arith.constant 0 : index
    %c0_74 = arith.constant 0 : index
    %113 = vector.load %arg6[%c0_73, %c0_74] : memref<1x128xf32, #tpu.memory_space<vmem>>, vector<1x128xf32>
    %114 = vector.broadcast %113 : vector<1x128xf32> to vector<64x128xf32>
    %115 = arith.addf %112, %114 : vector<64x128xf32>
    %cst_75 = arith.constant 0.000000e+00 : f32
    %cst_76 = arith.constant 6.000000e+00 : f32
    %116 = vector.broadcast %cst_75 : f32 to vector<64x128xf32>
    %117 = arith.maximumf %116, %115 : vector<64x128xf32>
    %118 = vector.broadcast %cst_76 : f32 to vector<64x128xf32>
    %119 = arith.minimumf %118, %117 : vector<64x128xf32>
    %120 = arith.truncf %119 : vector<64x128xf32> to vector<64x128xbf16>
    %c0_77 = arith.constant 0 : index
    %c0_78 = arith.constant 0 : index
    %121 = vector.load %arg7[%c0_77, %c0_78] : memref<128x8xbf16, #tpu.memory_space<vmem>>, vector<128x8xbf16>
    %cst_79 = arith.constant dense<0.000000e+00> : vector<64x8xf32>
    %122 = tpu.matmul %120, %121, %cst_79 {dimension_numbers = #tpu.dot_dimension_numbers<[1], [0], [0], [1], [0, 0, 1, 1], [], []>} : vector<64x128xbf16>, vector<128x8xbf16>, vector<64x8xf32> -> vector<64x8xf32>
    %c0_80 = arith.constant 0 : index
    %c0_81 = arith.constant 0 : index
    %123 = vector.load %arg8[%c0_80, %c0_81] : memref<1x8xf32, #tpu.memory_space<vmem>>, vector<1x8xf32>
    %124 = vector.broadcast %123 : vector<1x8xf32> to vector<64x8xf32>
    %125 = arith.addf %122, %124 : vector<64x8xf32>
    %126 = vector.shape_cast %6 : vector<4x16x8xf32> to vector<64x8xf32>
    %127 = arith.addf %125, %126 : vector<64x8xf32>
    %128 = vector.shape_cast %127 : vector<64x8xf32> to vector<4x16x8xf32>
    %c0_82 = arith.constant 0 : index
    %c0_83 = arith.constant 0 : index
    %c0_84 = arith.constant 0 : index
    %c0_85 = arith.constant 0 : index
    %129 = vector.load %arg9[%c0_82, %c0_83, %c0_84, %c0_85] : memref<1x4x16x8xf32, #tpu.memory_space<vmem>>, vector<1x4x16x8xf32>
    %130 = vector.shape_cast %129 : vector<1x4x16x8xf32> to vector<4x16x8xf32>
    %131 = vector.shape_cast %128 : vector<4x16x8xf32> to vector<1x4x16x8xf32>
    tpu.vector_store %arg9[%c0_82, %c0_83, %c0_84, %c0_85], %131 {strides = array<i32>} : memref<1x4x16x8xf32, #tpu.memory_space<vmem>>, vector<1x4x16x8xf32>,
    return
  }
  func.func @transform_0(%arg0: i32, %arg1: i32) -> (i32, i32, i32, i32) {
    %c0_i32 = arith.constant 0 : i32
    %c0_i32_0 = arith.constant 0 : i32
    %c0_i32_1 = arith.constant 0 : i32
    %c0_i32_2 = arith.constant 0 : i32
    return %arg0, %c0_i32, %c0_i32_0, %c0_i32_1 : i32, i32, i32, i32
  }
  func.func @transform_1(%arg0: i32, %arg1: i32) -> (i32, i32) {
    %c0_i32 = arith.constant 0 : i32
    %c0_i32_0 = arith.constant 0 : i32
    %c0_i32_1 = arith.constant 0 : i32
    return %c0_i32, %c0_i32_0 : i32, i32
  }
  func.func @transform_2(%arg0: i32, %arg1: i32) -> (i32, i32) {
    %c0_i32 = arith.constant 0 : i32
    %c0_i32_0 = arith.constant 0 : i32
    %c0_i32_1 = arith.constant 0 : i32
    return %c0_i32, %c0_i32_0 : i32, i32
  }
  func.func @transform_3(%arg0: i32, %arg1: i32) -> (i32, i32, i32) {
    %c0_i32 = arith.constant 0 : i32
    %c0_i32_0 = arith.constant 0 : i32
    %c0_i32_1 = arith.constant 0 : i32
    %c0_i32_2 = arith.constant 0 : i32
    return %c0_i32, %c0_i32_0, %c0_i32_1 : i32, i32, i32
  }
  func.func @transform_4(%arg0: i32, %arg1: i32) -> (i32, i32) {
    %c0_i32 = arith.constant 0 : i32
    %c0_i32_0 = arith.constant 0 : i32
    %c0_i32_1 = arith.constant 0 : i32
    return %c0_i32, %c0_i32_0 : i32, i32
  }
  func.func @transform_5(%arg0: i32, %arg1: i32) -> (i32, i32) {
    %c0_i32 = arith.constant 0 : i32
    %c0_i32_0 = arith.constant 0 : i32
    %c0_i32_1 = arith.constant 0 : i32
    return %c0_i32, %c0_i32_0 : i32, i32
  }
  func.func @transform_6(%arg0: i32, %arg1: i32) -> (i32, i32) {
    %c0_i32 = arith.constant 0 : i32
    %c0_i32_0 = arith.constant 0 : i32
    %c0_i32_1 = arith.constant 0 : i32
    return %c0_i32, %c0_i32_0 : i32, i32
  }
  func.func @transform_7(%arg0: i32, %arg1: i32) -> (i32, i32, i32, i32) {
    %c0_i32 = arith.constant 0 : i32
    %c0_i32_0 = arith.constant 0 : i32
    %c0_i32_1 = arith.constant 0 : i32
    return %arg0, %arg1, %c0_i32, %c0_i32_0 : i32, i32, i32, i32
  }
}

</mosaic_0001>

<llo_original>
// kernel: tpu_custom_call.1
$region0: #{tpu_custom_call.1}
  #allocation0 [shape = 'u32[]', space=smem, size = 0x4, offset = 0x4, fixed_abs, tag = 'smem constant byte address 0x4 - core index']
  #allocation1 [shape = 'u32[144,128]{1,0:T(1,128)}', space=vmem, size = 0x12000, scoped, tag = 'internal scratch']
  #allocation2 [shape = 'f32[6,18,128]{2,1,0:T(8,128)}', space=vmem, size = 0x12000, scoped, tag = 'scratch operand']
  %s0 = inlined_call_operand.vmem [shape: f32[2,16,16,8], index: 0, kind: input, shape index: {}]
  %s1 = inlined_call_operand.vmem [shape: bf16[8,128], index: 1, kind: input, shape index: {}]
  %s2 = inlined_call_operand.vmem [shape: f32[1,128], index: 2, kind: input, shape index: {}]
  %s3 = inlined_call_operand.vmem [shape: f32[3,3,128], index: 3, kind: input, shape index: {}]
  %s4 = inlined_call_operand.vmem [shape: f32[1,128], index: 4, kind: input, shape index: {}]
  %s5 = inlined_call_operand.vmem [shape: bf16[128,8], index: 5, kind: input, shape index: {}]
  %s6 = inlined_call_operand.vmem [shape: f32[1,8], index: 6, kind: input, shape index: {}]
  %s7 = inlined_call_operand.vmem [shape: f32[2,16,16,8], index: 7, kind: output, shape index: {}]
  %s8 = sld [smem:[#allocation0]]
  $region61: #{tpu_custom_call.1} parent=0
    _
  %s10 = ssub.s32 1, %s8
  %s11 = scalar_select 0, %s10, %s8
  loop: start=0, step=1, limit=10
  $region2: #{tpu_custom_call.1} parent=0 // loop_pre_header
    _
  $region3: #{tpu_custom_call.1} parent=0 // loop_header
    %s13 = sphi 0, %s17
    %p14 = scmp.ge.s32.totalorder %s13, 10
    %s20 = sphi 0, %s32
    %s21 = sphi 0, %s28
    %s22 = sphi 0, %s20
    %s23 = sphi 0, %s21
    %s24 = sphi 0, %s22
    %s25 = sphi 0, %s23
    %s35 = sphi 0, %s37
    %s38 = sphi 0, %s35
    %s39 = sphi 0, %s38
    %s55 = sphi 0, %s39
    %s59 = sphi 0, %s59
    %s61 = sphi 0, %s59
    %s62 = sphi 0, %s61
    %s76 = sphi 0, %s62
    %s80 = sphi 0, %s80
    %s82 = sphi 0, %s80
    %s83 = sphi 0, %s82
    %s97 = sphi 0, %s83
    %s101 = sphi 0, %s101
    %s103 = sphi 0, %s101
    %s104 = sphi 0, %s103
    %s118 = sphi 0, %s104
    %s122 = sphi 0, %s122
    %s124 = sphi 0, %s122
    %s125 = sphi 0, %s124
    %s139 = sphi 0, %s125
    %s143 = sphi 0, %s143
    %s145 = sphi 0, %s143
    %s146 = sphi 0, %s145
    %s160 = sphi 0, %s146
    %s164 = sphi 0, %s164
    %s166 = sphi 0, %s164
    %s167 = sphi 0, %s166
    %s181 = sphi 0, %s167
    %s189 = sphi 0, %s191
    %s192 = sphi 0, %s189
    %s193 = sphi 0, %s192
    %s209 = sphi 0, %s193
  $region4: #{tpu_custom_call.1} parent=0 // loop_header_branch
    %16 = sbr.rel (%p14) target = $region8
  $region5: #{tpu_custom_call.1} parent=0 // loop_body
    %s18 = ssub.s32 %s13, 1
    %s19 = ssub.s32 %s13, 2
    %s26 = sadd.s32 1, %s21
    %p27 = scmp.ge.s32.totalorder %s26, 4
    %s28 = scalar_select %p27, 0, %s26
    %s29 = sadd.s32 1, %s20
    %s30 = scalar_select %p27, %s29, %s20
    %p31 = scmp.ge.s32.totalorder %s30, 2
    %s32 = scalar_select %p31, 0, %s30
    %s33 = ssub.s32 %s20, %s32
    %p34 = scmp.eq.s32.totalorder %s33, 0
    %s36 = sadd.s32 %s35, 1
    %s37 = scalar_select %p34, %s35, %s36
    %p40 = pneg %p34
    %p41 = scmp.eq.s32.totalorder %s13, 7
    %p42 = por %p40, %p41
    %p43 = scmp.ne.s32.totalorder %s35, %s38
    %p44 = scmp.eq.s32.totalorder %s13, 0
    %p45 = por %p43, %p44
    %p46 = scmp.ne.s32.totalorder %s35, %s38
    %p47 = scmp.eq.s32.totalorder %s18, 7
    %p48 = por %p46, %p47
    %p49 = scmp.ne.s32.totalorder %s38, %s39
    %p50 = scmp.eq.s32.totalorder %s18, 0
    %p51 = por %p49, %p50
    %p52 = scmp.ne.s32.totalorder %s38, %s39
    %p53 = scmp.eq.s32.totalorder %s19, 7
    %p54 = por %p52, %p53
    %p56 = scmp.ne.s32.totalorder %s39, %s55
    %p57 = scmp.eq.s32.totalorder %s19, 0
    %p58 = por %p56, %p57
    %s60 = sadd.s32 %s59, 1
    %p63 = scmp.eq.s32.totalorder %s13, 7
    %p64 = scmp.ne.s32.totalorder %s59, %s61
    %p65 = scmp.eq.s32.totalorder %s13, 0
    %p66 = por %p64, %p65
    %p67 = scmp.ne.s32.totalorder %s59, %s61
    %p68 = scmp.eq.s32.totalorder %s18, 7
    %p69 = por %p67, %p68
    %p70 = scmp.ne.s32.totalorder %s61, %s62
    %p71 = scmp.eq.s32.totalorder %s18, 0
    %p72 = por %p70, %p71
    %p73 = scmp.ne.s32.totalorder %s61, %s62
    %p74 = scmp.eq.s32.totalorder %s19, 7
    %p75 = por %p73, %p74
    %p77 = scmp.ne.s32.totalorder %s62, %s76
    %p78 = scmp.eq.s32.totalorder %s19, 0
    %p79 = por %p77, %p78
    %s81 = sadd.s32 %s80, 1
    %p84 = scmp.eq.s32.totalorder %s13, 7
    %p85 = scmp.ne.s32.totalorder %s80, %s82
    %p86 = scmp.eq.s32.totalorder %s13, 0
    %p87 = por %p85, %p86
    %p88 = scmp.ne.s32.totalorder %s80, %s82
    %p89 = scmp.eq.s32.totalorder %s18, 7
    %p90 = por %p88, %p89
    %p91 = scmp.ne.s32.totalorder %s82, %s83
    %p92 = scmp.eq.s32.totalorder %s18, 0
    %p93 = por %p91, %p92
    %p94 = scmp.ne.s32.totalorder %s82, %s83
    %p95 = scmp.eq.s32.totalorder %s19, 7
    %p96 = por %p94, %p95
    %p98 = scmp.ne.s32.totalorder %s83, %s97
    %p99 = scmp.eq.s32.totalorder %s19, 0
    %p100 = por %p98, %p99
    %s102 = sadd.s32 %s101, 1
    %p105 = scmp.eq.s32.totalorder %s13, 7
    %p106 = scmp.ne.s32.totalorder %s101, %s103
    %p107 = scmp.eq.s32.totalorder %s13, 0
    %p108 = por %p106, %p107
    %p109 = scmp.ne.s32.totalorder %s101, %s103
    %p110 = scmp.eq.s32.totalorder %s18, 7
    %p111 = por %p109, %p110
    %p112 = scmp.ne.s32.totalorder %s103, %s104
    %p113 = scmp.eq.s32.totalorder %s18, 0
    %p114 = por %p112, %p113
    %p115 = scmp.ne.s32.totalorder %s103, %s104
    %p116 = scmp.eq.s32.totalorder %s19, 7
    %p117 = por %p115, %p116
    %p119 = scmp.ne.s32.totalorder %s104, %s118
    %p120 = scmp.eq.s32.totalorder %s19, 0
    %p121 = por %p119, %p120
    %s123 = sadd.s32 %s122, 1
    %p126 = scmp.eq.s32.totalorder %s13, 7
    %p127 = scmp.ne.s32.totalorder %s122, %s124
    %p128 = scmp.eq.s32.totalorder %s13, 0
    %p129 = por %p127, %p128
    %p130 = scmp.ne.s32.totalorder %s122, %s124
    %p131 = scmp.eq.s32.totalorder %s18, 7
    %p132 = por %p130, %p131
    %p133 = scmp.ne.s32.totalorder %s124, %s125
    %p134 = scmp.eq.s32.totalorder %s18, 0
    %p135 = por %p133, %p134
    %p136 = scmp.ne.s32.totalorder %s124, %s125
    %p137 = scmp.eq.s32.totalorder %s19, 7
    %p138 = por %p136, %p137
    %p140 = scmp.ne.s32.totalorder %s125, %s139
    %p141 = scmp.eq.s32.totalorder %s19, 0
    %p142 = por %p140, %p141
    %s144 = sadd.s32 %s143, 1
    %p147 = scmp.eq.s32.totalorder %s13, 7
    %p148 = scmp.ne.s32.totalorder %s143, %s145
    %p149 = scmp.eq.s32.totalorder %s13, 0
    %p150 = por %p148, %p149
    %p151 = scmp.ne.s32.totalorder %s143, %s145
    %p152 = scmp.eq.s32.totalorder %s18, 7
    %p153 = por %p151, %p152
    %p154 = scmp.ne.s32.totalorder %s145, %s146
    %p155 = scmp.eq.s32.totalorder %s18, 0
    %p156 = por %p154, %p155
    %p157 = scmp.ne.s32.totalorder %s145, %s146
    %p158 = scmp.eq.s32.totalorder %s19, 7
    %p159 = por %p157, %p158
    %p161 = scmp.ne.s32.totalorder %s146, %s160
    %p162 = scmp.eq.s32.totalorder %s19, 0
    %p163 = por %p161, %p162
    %s165 = sadd.s32 %s164, 1
    %p168 = scmp.eq.s32.totalorder %s13, 7
    %p169 = scmp.ne.s32.totalorder %s164, %s166
    %p170 = scmp.eq.s32.totalorder %s13, 0
    %p171 = por %p169, %p170
    %p172 = scmp.ne.s32.totalorder %s164, %s166
    %p173 = scmp.eq.s32.totalorder %s18, 7
    %p174 = por %p172, %p173
    %p175 = scmp.ne.s32.totalorder %s166, %s167
    %p176 = scmp.eq.s32.totalorder %s18, 0
    %p177 = por %p175, %p176
    %p178 = scmp.ne.s32.totalorder %s166, %s167
    %p179 = scmp.eq.s32.totalorder %s19, 7
    %p180 = por %p178, %p179
    %p182 = scmp.ne.s32.totalorder %s167, %s181
    %p183 = scmp.eq.s32.totalorder %s19, 0
    %p184 = por %p182, %p183
    %s185 = ssub.s32 %s20, %s32
    %s186 = ssub.s32 %s21, %s28
    %s187 = sor.u32 %s185, %s186
    %p188 = scmp.eq.s32.totalorder %s187, 0
    %s190 = sadd.s32 %s189, 1
    %s191 = scalar_select %p188, %s189, %s190
    %p194 = pneg %p188
    %p195 = scmp.eq.s32.totalorder %s13, 7
    %p196 = por %p194, %p195
    %p197 = scmp.ne.s32.totalorder %s189, %s192
    %p198 = scmp.eq.s32.totalorder %s13, 0
    %p199 = por %p197, %p198
    %p200 = scmp.ne.s32.totalorder %s189, %s192
    %p201 = scmp.eq.s32.totalorder %s18, 7
    %p202 = por %p200, %p201
    %p203 = scmp.ne.s32.totalorder %s192, %s193
    %p204 = scmp.eq.s32.totalorder %s18, 0
    %p205 = por %p203, %p204
    %p206 = scmp.ne.s32.totalorder %s192, %s193
    %p207 = scmp.eq.s32.totalorder %s19, 7
    %p208 = por %p206, %p207
    %p210 = scmp.ne.s32.totalorder %s193, %s209
    %p211 = scmp.eq.s32.totalorder %s19, 0
    %p212 = por %p210, %p211
    %p213 = scmp.le.s32.totalorder 1, %s13
    %p214 = scmp.lt.s32.totalorder %s13, 9
    %p215 = pnand %p213, %p214
    %p216 = pneg %p215
    // Predicated region
    $region9: #{tpu_custom_call.1} parent=5 // pred_check
      _
    $region10: #{tpu_custom_call.1} parent=5 // pred_check_branch
      %218 = sbr.rel (%p215) target = $region12
    $region11: #{tpu_custom_call.1} parent=5 // pred_region
      %s219 = ssub.s32 %s13, 1
      // Predicated region
      $region13: #{tpu_custom_call.1} parent=11 // pred_check
        %p220 = pneg %p72
      $region14: #{tpu_custom_call.1} parent=11 // pred_check_branch
        %222 = sbr.rel (%p220) target = $region16
      $region15: #{tpu_custom_call.1} parent=11 // pred_region
        _
      $region16: #{tpu_custom_call.1} parent=11 // pred_fallthru
        _
      // Predicated region
      $region17: #{tpu_custom_call.1} parent=11 // pred_check
        %p223 = pneg %p93
      $region18: #{tpu_custom_call.1} parent=11 // pred_check_branch
        %225 = sbr.rel (%p223) target = $region20
      $region19: #{tpu_custom_call.1} parent=11 // pred_region
        _
      $region20: #{tpu_custom_call.1} parent=11 // pred_fallthru
        _
      // Predicated region
      $region21: #{tpu_custom_call.1} parent=11 // pred_check
        %p226 = pneg %p114
      $region22: #{tpu_custom_call.1} parent=11 // pred_check_branch
        %228 = sbr.rel (%p226) target = $region24
      $region23: #{tpu_custom_call.1} parent=11 // pred_region
        _
      $region24: #{tpu_custom_call.1} parent=11 // pred_fallthru
        _
      // Predicated region
      $region25: #{tpu_custom_call.1} parent=11 // pred_check
        %p229 = pneg %p135
      $region26: #{tpu_custom_call.1} parent=11 // pred_check_branch
        %231 = sbr.rel (%p229) target = $region28
      $region27: #{tpu_custom_call.1} parent=11 // pred_region
        _
      $region28: #{tpu_custom_call.1} parent=11 // pred_fallthru
        _
      // Predicated region
      $region29: #{tpu_custom_call.1} parent=11 // pred_check
        %p232 = pneg %p156
      $region30: #{tpu_custom_call.1} parent=11 // pred_check_branch
        %234 = sbr.rel (%p232) target = $region32
      $region31: #{tpu_custom_call.1} parent=11 // pred_region
        _
      $region32: #{tpu_custom_call.1} parent=11 // pred_fallthru
        _
      // Predicated region
      $region33: #{tpu_custom_call.1} parent=11 // pred_check
        %p235 = pneg %p177
      $region34: #{tpu_custom_call.1} parent=11 // pred_check_branch
        %237 = sbr.rel (%p235) target = $region36
      $region35: #{tpu_custom_call.1} parent=11 // pred_region
        _
      $region36: #{tpu_custom_call.1} parent=11 // pred_fallthru
        _
    $region12: #{tpu_custom_call.1} parent=5 // pred_fallthru
      _
    %p238 = scmp.lt.s32.totalorder %s13, 8
    // Predicated region
    $region37: #{tpu_custom_call.1} parent=5 // pred_check
      %p239 = pneg %p238
    $region38: #{tpu_custom_call.1} parent=5 // pred_check_branch
      %241 = sbr.rel (%p239) target = $region40
    $region39: #{tpu_custom_call.1} parent=5 // pred_region
      // Predicated region
      $region41: #{tpu_custom_call.1} parent=39 // pred_check
        %p242 = pneg %p45
      $region42: #{tpu_custom_call.1} parent=39 // pred_check_branch
        %244 = sbr.rel (%p242) target = $region44
      $region43: #{tpu_custom_call.1} parent=39 // pred_region
        %p245 = scmp.lt.s32.totalorder %s20, 1
        %s246 = scalar_select %p245, %s20, 1
        %s247 = smul.addr %s246, 32
        %s248 = smul.addr %s247, 8
        %s249 = scalar_lea.vmem %s0, %s248
      $region44: #{tpu_custom_call.1} parent=39 // pred_fallthru
        _
    $region40: #{tpu_custom_call.1} parent=5 // pred_fallthru
      _
    %p250 = scmp.le.s32.totalorder 1, %s13
    %p251 = scmp.lt.s32.totalorder %s13, 9
    %p252 = pnand %p250, %p251
    %p253 = pneg %p252
    // Predicated region
    $region45: #{tpu_custom_call.1} parent=5 // pred_check
      _
    $region46: #{tpu_custom_call.1} parent=5 // pred_check_branch
      %255 = sbr.rel (%p252) target = $region48
    $region47: #{tpu_custom_call.1} parent=5 // pred_region
      %s256 = ssub.s32 %s13, 1
      %p257 = scmp.lt.s32.totalorder %s22, 1
      %s258 = scalar_select %p257, %s22, 1
      %s259 = smul.addr %s258, 32
      %s260 = smul.addr %s259, 8
      %s261 = scalar_lea.vmem %s0, %s260
      %p262 = pneg %p51
      %p263 = pneg %p48
      %p264 = pneg %p72
      %p265 = pneg %p69
      %p266 = pneg %p93
      %p267 = pneg %p90
      %p268 = pneg %p114
      %p269 = pneg %p111
      %p270 = pneg %p135
      %p271 = pneg %p132
      %p272 = pneg %p156
      %p273 = pneg %p153
      %p274 = pneg %p177
      %p275 = pneg %p174
      %p276 = pneg %p205
      %p277 = pneg %p202
      %s278 = smul.u32 4, %s23
      %p279 = scmp.lt.s32.totalorder %s22, 1
      %s280 = scalar_select %p279, %s22, 1
      %p281 = scmp.lt.s32.totalorder %s278, 15
      %s282 = scalar_select %p281, %s278, 15
      %s283 = smul.addr %s282, 2
      %s284 = smul.addr %s280, 32
      %s285 = sadd.s32 %s283, %s284
      %s286 = smul.addr %s285, 8
      %s287 = scalar_lea.vmem %s7, %s286
      %p288 = scmp.lt.s32.totalorder %s22, 1
      %s289 = scalar_select %p288, %s22, 1
      %s290 = smul.addr %s289, 32
      %s291 = smul.addr %s290, 8
      %s292 = scalar_lea.vmem %s0, %s291
      %s293 = smul.u32 4, %s23
      %p294 = scmp.lt.s32.totalorder %s22, 1
      %s295 = scalar_select %p294, %s22, 1
      %p296 = scmp.lt.s32.totalorder %s293, 15
      %s297 = scalar_select %p296, %s293, 15
      %s298 = smul.addr %s297, 2
      %s299 = smul.addr %s295, 32
      %s300 = sadd.s32 %s298, %s299
      %s301 = smul.addr %s300, 8
      %s302 = scalar_lea.vmem %s7, %s301
      %s303 = smul.u32 4, %s23
      %s305 = smul.u32 %s23, 4
      %s306 = ssub.s32 %s305, 1
      %s307 = sadd.s32 %s305, 4
      %s308 = smul.u32 %s305, 16
      %s309 = scalar_lea.vmem %s292, %s308
      %v310 = vld [vmem:[%s309] sm:$0xff]
      %v311 = vld [vmem:[%s309 + $0x8] sm:$0xff]
      %v312 = vld [vmem:[%s309 + $0x10] sm:$0xff]
      %v313 = vld [vmem:[%s309 + $0x18] sm:$0xff]
      %v314 = vld [vmem:[%s309 + $0x20] sm:$0xff]
      %v315 = vld [vmem:[%s309 + $0x28] sm:$0xff]
      %v316 = vld [vmem:[%s309 + $0x30] sm:$0xff]
      %v317 = vld [vmem:[%s309 + $0x38] sm:$0xff]
      %v318 = vpack.c.bf16 %v311, %v310
      %v319 = vpack.c.bf16 %v313, %v312
      %v320 = vpack.c.bf16 %v315, %v314
      %v321 = vpack.c.bf16 %v317, %v316
      %v322 = vld [vmem:[%s1] sm:$0xf]
      %v323 = vld [vmem:[%s2] sm:$0x1]
      %v325 = vlaneseq
      %v326 = vshrl.u32 %v325, 7
      %v327 = vsub.s32 0, %v326
      %v328 = vrot.slane %v323, %v327
      %vm330 = vcmask 64512
      %v332 = vsel %vm330, %v318, 0
      %v335 = vsel %vm330, %v319, 0
      %v338 = vsel %vm330, %v320, 0
      %v341 = vsel %vm330, %v321, 0
      %vm343 = vcmask 1043456
      %v345 = vsel %vm343, %v322, 0
      %347 = vmatprep.subr.bf16.mxu0 0
      %348 = vmatpush1.bf16.msra.mxu0 %v345
      %349 = vmatprep.subr.bf16.mxu0 0
      %350 = vmatpush1.bf16.msra.mxu0 0
      %351 = vmatprep.subr.bf16.mxu0 0
      %352 = vmatpush1.bf16.msra.mxu0 0
      %353 = vmatprep.subr.bf16.mxu0 0
      %354 = vmatpush1.bf16.msra.mxu0 0
      %355 = vmatprep.subr.bf16.mxu0 0
      %356 = vmatpush1.bf16.msra.mxu0 0
      %357 = vmatprep.subr.bf16.mxu0 0
      %358 = vmatpush1.bf16.msra.mxu0 0
      %359 = vmatprep.subr.bf16.mxu0 0
      %360 = vmatpush1.bf16.msra.mxu0 0
      %361 = vmatprep.subr.bf16.mxu0 0
      %362 = vmatpush1.bf16.msra.mxu0 0
      %363 = vmatprep.subr.bf16.mxu0 0
      %364 = vmatpush1.bf16.msra.mxu0 0
      %365 = vmatprep.subr.bf16.mxu0 0
      %366 = vmatpush1.bf16.msra.mxu0 0
      %367 = vmatprep.subr.bf16.mxu0 0
      %368 = vmatpush1.bf16.msra.mxu0 0
      %369 = vmatprep.subr.bf16.mxu0 0
      %370 = vmatpush1.bf16.msra.mxu0 0
      %371 = vmatprep.subr.bf16.mxu0 0
      %372 = vmatpush1.bf16.msra.mxu0 0
      %373 = vmatprep.subr.bf16.mxu0 0
      %374 = vmatpush1.bf16.msra.mxu0 0
      %375 = vmatprep.subr.bf16.mxu0 0
      %376 = vmatpush1.bf16.msra.mxu0 0
      %377 = vmatprep.subr.bf16.mxu0 0
      %378 = vmatpush1.bf16.msra.mxu0 0
      %379 = vmatprep.mubr.bf16.mxu0 0
      %380 = vmatmul.mubr.bf16.gmra.mrb[0].mxu0 %v332
      %v381 = vpop.f32.mrb[0].mxu0
      %v382 = vadd.f32 %v328, %v381
      %v383 = vpop.f32.mrb[0].mxu0
      %v384 = vpop.f32.mrb[0].mxu0
      %v385 = vadd.f32 %v328, %v384
      %v386 = vpop.f32.mrb[0].mxu0
      %387 = vmatprep.mubr.bf16.mxu0 0
      %388 = vmatmul.mubr.bf16.gmra.mrb[0].mxu0 %v335
      %v389 = vpop.f32.mrb[0].mxu0
      %v390 = vadd.f32 %v328, %v389
      %v391 = vpop.f32.mrb[0].mxu0
      %v392 = vpop.f32.mrb[0].mxu0
      %v393 = vadd.f32 %v328, %v392
      %v394 = vpop.f32.mrb[0].mxu0
      %395 = vmatprep.mubr.bf16.mxu0 0
      %396 = vmatmul.mubr.bf16.gmra.mrb[0].mxu0 %v338
      %v397 = vpop.f32.mrb[0].mxu0
      %v398 = vadd.f32 %v328, %v397
      %v399 = vpop.f32.mrb[0].mxu0
      %v400 = vpop.f32.mrb[0].mxu0
      %v401 = vadd.f32 %v328, %v400
      %v402 = vpop.f32.mrb[0].mxu0
      %403 = vmatprep.mubr.bf16.mxu0 0
      %404 = vmatmul.mubr.bf16.gmra.mrb[0].mxu0 %v341
      %v405 = vpop.f32.mrb[0].mxu0
      %v406 = vadd.f32 %v328, %v405
      %v407 = vpop.f32.mrb[0].mxu0
      %v408 = vpop.f32.mrb[0].mxu0
      %v409 = vadd.f32 %v328, %v408
      %v410 = vpop.f32.mrb[0].mxu0
      %411 = vdwg.mxu0
      %v412 = vmax.f32 %v382, 0.0
      %v413 = vmax.f32 %v385, 0.0
      %v414 = vmax.f32 %v390, 0.0
      %v415 = vmax.f32 %v393, 0.0
      %v416 = vmax.f32 %v398, 0.0
      %v417 = vmax.f32 %v401, 0.0
      %v418 = vmax.f32 %v406, 0.0
      %v419 = vmax.f32 %v409, 0.0
      %v420 = vmin.f32 %v412, 6.0
      %v421 = vmin.f32 %v413, 6.0
      %v422 = vmin.f32 %v414, 6.0
      %v423 = vmin.f32 %v415, 6.0
      %v424 = vmin.f32 %v416, 6.0
      %v425 = vmin.f32 %v417, 6.0
      %v426 = vmin.f32 %v418, 6.0
      %v427 = vmin.f32 %v419, 6.0
      %p428 = scmp.ge.s32.totalorder %s306, 0
      %s429 = scalar_select %p428, 1, 0
      %s430 = scvt.s32.f32 %s429
      %p431 = scmp.le.s32.totalorder %s307, 15
      %s432 = scalar_select %p431, 1, 0
      %s433 = scvt.s32.f32 %s432
      %p434 = scmp.gt.s32.totalorder %s306, 0
      %s435 = scalar_select %p434, %s306, 0
      %s436 = smul.u32 %s435, 16
      %s437 = scalar_lea.vmem %s292, %s436
      %v438 = vld [vmem:[%s437] sm:$0xff]
      %v439 = vld [vmem:[%s437 + $0x8] sm:$0xff]
      %v440 = vpack.c.bf16 %v439, %v438
      %v442 = vsel %vm330, %v440, 0
      %444 = vmatprep.subr.bf16.mxu0 0
      %445 = vmatpush1.bf16.msra.mxu0 %v345
      %446 = vmatprep.subr.bf16.mxu0 0
      %447 = vmatpush1.bf16.msra.mxu0 0
      %448 = vmatprep.subr.bf16.mxu0 0
      %449 = vmatpush1.bf16.msra.mxu0 0
      %450 = vmatprep.subr.bf16.mxu0 0
      %451 = vmatpush1.bf16.msra.mxu0 0
      %452 = vmatprep.subr.bf16.mxu0 0
      %453 = vmatpush1.bf16.msra.mxu0 0
      %454 = vmatprep.subr.bf16.mxu0 0
      %455 = vmatpush1.bf16.msra.mxu0 0
      %456 = vmatprep.subr.bf16.mxu0 0
      %457 = vmatpush1.bf16.msra.mxu0 0
      %458 = vmatprep.subr.bf16.mxu0 0
      %459 = vmatpush1.bf16.msra.mxu0 0
      %460 = vmatprep.subr.bf16.mxu0 0
      %461 = vmatpush1.bf16.msra.mxu0 0
      %462 = vmatprep.subr.bf16.mxu0 0
      %463 = vmatpush1.bf16.msra.mxu0 0
      %464 = vmatprep.subr.bf16.mxu0 0
      %465 = vmatpush1.bf16.msra.mxu0 0
      %466 = vmatprep.subr.bf16.mxu0 0
      %467 = vmatpush1.bf16.msra.mxu0 0
      %468 = vmatprep.subr.bf16.mxu0 0
      %469 = vmatpush1.bf16.msra.mxu0 0
      %470 = vmatprep.subr.bf16.mxu0 0
      %471 = vmatpush1.bf16.msra.mxu0 0
      %472 = vmatprep.subr.bf16.mxu0 0
      %473 = vmatpush1.bf16.msra.mxu0 0
      %474 = vmatprep.subr.bf16.mxu0 0
      %475 = vmatpush1.bf16.msra.mxu0 0
      %476 = vmatprep.mubr.bf16.mxu0 0
      %477 = vmatmul.mubr.bf16.gmra.mrb[0].mxu0 %v442
      %v478 = vpop.f32.mrb[0].mxu0
      %v479 = vadd.f32 %v328, %v478
      %v480 = vpop.f32.mrb[0].mxu0
      %v481 = vpop.f32.mrb[0].mxu0
      %v482 = vadd.f32 %v328, %v481
      %v483 = vpop.f32.mrb[0].mxu0
      %484 = vdwg.mxu0
      %v485 = vmax.f32 %v479, 0.0
      %v486 = vmax.f32 %v482, 0.0
      %v487 = vmin.f32 %v485, 6.0
      %v488 = vmin.f32 %v486, 6.0
      %v489 = vstv %s430
      %v490 = vmul.f32 %v487, %v489
      %v491 = vmul.f32 %v488, %v489
      %p492 = scmp.lt.s32.totalorder %s307, 15
      %s493 = scalar_select %p492, %s307, 15
      %s494 = smul.u32 %s493, 16
      %s495 = scalar_lea.vmem %s292, %s494
      %v496 = vld [vmem:[%s495] sm:$0xff]
      %v497 = vld [vmem:[%s495 + $0x8] sm:$0xff]
      %v498 = vpack.c.bf16 %v497, %v496
      %v500 = vsel %vm330, %v498, 0
      %502 = vmatprep.subr.bf16.mxu0 0
      %503 = vmatpush1.bf16.msra.mxu0 %v345
      %504 = vmatprep.subr.bf16.mxu0 0
      %505 = vmatpush1.bf16.msra.mxu0 0
      %506 = vmatprep.subr.bf16.mxu0 0
      %507 = vmatpush1.bf16.msra.mxu0 0
      %508 = vmatprep.subr.bf16.mxu0 0
      %509 = vmatpush1.bf16.msra.mxu0 0
      %510 = vmatprep.subr.bf16.mxu0 0
      %511 = vmatpush1.bf16.msra.mxu0 0
      %512 = vmatprep.subr.bf16.mxu0 0
      %513 = vmatpush1.bf16.msra.mxu0 0
      %514 = vmatprep.subr.bf16.mxu0 0
      %515 = vmatpush1.bf16.msra.mxu0 0
      %516 = vmatprep.subr.bf16.mxu0 0
      %517 = vmatpush1.bf16.msra.mxu0 0
      %518 = vmatprep.subr.bf16.mxu0 0
      %519 = vmatpush1.bf16.msra.mxu0 0
      %520 = vmatprep.subr.bf16.mxu0 0
      %521 = vmatpush1.bf16.msra.mxu0 0
      %522 = vmatprep.subr.bf16.mxu0 0
      %523 = vmatpush1.bf16.msra.mxu0 0
      %524 = vmatprep.subr.bf16.mxu0 0
      %525 = vmatpush1.bf16.msra.mxu0 0
      %526 = vmatprep.subr.bf16.mxu0 0
      %527 = vmatpush1.bf16.msra.mxu0 0
      %528 = vmatprep.subr.bf16.mxu0 0
      %529 = vmatpush1.bf16.msra.mxu0 0
      %530 = vmatprep.subr.bf16.mxu0 0
      %531 = vmatpush1.bf16.msra.mxu0 0
      %532 = vmatprep.subr.bf16.mxu0 0
      %533 = vmatpush1.bf16.msra.mxu0 0
      %534 = vmatprep.mubr.bf16.mxu0 0
      %535 = vmatmul.mubr.bf16.gmra.mrb[0].mxu0 %v500
      %v536 = vpop.f32.mrb[0].mxu0
      %v537 = vadd.f32 %v328, %v536
      %v538 = vpop.f32.mrb[0].mxu0
      %v539 = vpop.f32.mrb[0].mxu0
      %v540 = vadd.f32 %v328, %v539
      %v541 = vpop.f32.mrb[0].mxu0
      %542 = vdwg.mxu0
      %v543 = vmax.f32 %v537, 0.0
      %v544 = vmax.f32 %v540, 0.0
      %v545 = vmin.f32 %v543, 6.0
      %v546 = vmin.f32 %v544, 6.0
      %v547 = vstv %s433
      %v548 = vmul.f32 %v545, %v547
      %v549 = vmul.f32 %v546, %v547
      %v550 = vld [vmem:[%s3] sm:$0x7]
      %v551 = vld [vmem:[%s3 + $0x4] sm:$0x7]
      %v552 = vld [vmem:[%s3 + $0x8] sm:$0x7]
      %553 = vst [vmem:[#allocation2] sm:$0x1] 0.0
      %554 = vst [vmem:[#allocation2 + $0x18] sm:$0x1] 0.0
      %555 = vst [vmem:[#allocation2 + $0x30] sm:$0x1] 0.0
      %556 = vst [vmem:[#allocation2 + $0x48] sm:$0x1] 0.0
      %557 = vst [vmem:[#allocation2 + $0x60] sm:$0x1] 0.0
      %558 = vst [vmem:[#allocation2 + $0x78] sm:$0x1] 0.0
      %559 = vst [vmem:[#allocation2 + $0x11] sm:$0x1] 0.0
      %560 = vst [vmem:[#allocation2 + $0x29] sm:$0x1] 0.0
      %561 = vst [vmem:[#allocation2 + $0x41] sm:$0x1] 0.0
      %562 = vst [vmem:[#allocation2 + $0x59] sm:$0x1] 0.0
      %563 = vst [vmem:[#allocation2 + $0x71] sm:$0x1] 0.0
      %564 = vst [vmem:[#allocation2 + $0x89] sm:$0x1] 0.0
      %565 = vst [vmem:[#allocation2 + $0x1] sm:$0xff] %v490
      %566 = vst [vmem:[#allocation2 + $0x9] sm:$0xff] %v491
      %s567 = scalar_lea.vmem [#allocation2], 24
      %568 = vst [vmem:[%s567 + $0x1] sm:$0xff] %v420
      %569 = vst [vmem:[%s567 + $0x9] sm:$0xff] %v421
      %570 = vst [vmem:[%s567 + $0x19] sm:$0xff] %v422
      %571 = vst [vmem:[%s567 + $0x21] sm:$0xff] %v423
      %572 = vst [vmem:[%s567 + $0x31] sm:$0xff] %v424
      %573 = vst [vmem:[%s567 + $0x39] sm:$0xff] %v425
      %574 = vst [vmem:[%s567 + $0x49] sm:$0xff] %v426
      %575 = vst [vmem:[%s567 + $0x51] sm:$0xff] %v427
      %s576 = scalar_lea.vmem [#allocation2], 120
      %577 = vst [vmem:[%s576 + $0x1] sm:$0xff] %v548
      %578 = vst [vmem:[%s576 + $0x9] sm:$0xff] %v549
      %v579 = vld [vmem:[#allocation2] sm:$0xff]
      %v580 = vld [vmem:[#allocation2 + $0x8] sm:$0xff]
      %v581 = vld [vmem:[#allocation2 + $0x18] sm:$0xff]
      %v582 = vld [vmem:[#allocation2 + $0x20] sm:$0xff]
      %v583 = vld [vmem:[#allocation2 + $0x30] sm:$0xff]
      %v584 = vld [vmem:[#allocation2 + $0x38] sm:$0xff]
      %v585 = vld [vmem:[#allocation2 + $0x48] sm:$0xff]
      %v586 = vld [vmem:[#allocation2 + $0x50] sm:$0xff]
      %v587 = vlaneseq
      %v588 = vshrl.u32 %v587, 7
      %v589 = vsub.s32 0, %v588
      %v590 = vrot.slane %v550, %v589
      %v591 = vmul.f32 %v579, %v590
      %v592 = vmul.f32 %v580, %v590
      %v593 = vmul.f32 %v581, %v590
      %v594 = vmul.f32 %v582, %v590
      %v595 = vmul.f32 %v583, %v590
      %v596 = vmul.f32 %v584, %v590
      %v597 = vmul.f32 %v585, %v590
      %v598 = vmul.f32 %v586, %v590
      %v599 = vld [vmem:[#allocation2 + $0x1] sm:$0xff]
      %v600 = vld [vmem:[#allocation2 + $0x9] sm:$0xff]
      %v601 = vld [vmem:[#allocation2 + $0x19] sm:$0xff]
      %v602 = vld [vmem:[#allocation2 + $0x21] sm:$0xff]
      %v603 = vld [vmem:[#allocation2 + $0x31] sm:$0xff]
      %v604 = vld [vmem:[#allocation2 + $0x39] sm:$0xff]
      %v605 = vld [vmem:[#allocation2 + $0x49] sm:$0xff]
      %v606 = vld [vmem:[#allocation2 + $0x51] sm:$0xff]
      %v607 = vlaneseq
      %v608 = vshrl.u32 %v607, 7
      %v609 = vsub.s32 1, %v608
      %v610 = vrot.slane %v550, %v609
      %v611 = vmul.f32 %v599, %v610
      %v612 = vmul.f32 %v600, %v610
      %v613 = vmul.f32 %v601, %v610
      %v614 = vmul.f32 %v602, %v610
      %v615 = vmul.f32 %v603, %v610
      %v616 = vmul.f32 %v604, %v610
      %v617 = vmul.f32 %v605, %v610
      %v618 = vmul.f32 %v606, %v610
      %v619 = vadd.f32 %v591, %v611
      %v620 = vadd.f32 %v592, %v612
      %v621 = vadd.f32 %v593, %v613
      %v622 = vadd.f32 %v594, %v614
      %v623 = vadd.f32 %v595, %v615
      %v624 = vadd.f32 %v596, %v616
      %v625 = vadd.f32 %v597, %v617
      %v626 = vadd.f32 %v598, %v618
      %v627 = vld [vmem:[#allocation2 + $0x2] sm:$0xff]
      %v628 = vld [vmem:[#allocation2 + $0xa] sm:$0xff]
      %v629 = vld [vmem:[#allocation2 + $0x1a] sm:$0xff]
      %v630 = vld [vmem:[#allocation2 + $0x22] sm:$0xff]
      %v631 = vld [vmem:[#allocation2 + $0x32] sm:$0xff]
      %v632 = vld [vmem:[#allocation2 + $0x3a] sm:$0xff]
      %v633 = vld [vmem:[#allocation2 + $0x4a] sm:$0xff]
      %v634 = vld [vmem:[#allocation2 + $0x52] sm:$0xff]
      %v635 = vlaneseq
      %v636 = vshrl.u32 %v635, 7
      %v637 = vsub.s32 2, %v636
      %v638 = vrot.slane %v550, %v637
      %v639 = vmul.f32 %v627, %v638
      %v640 = vmul.f32 %v628, %v638
      %v641 = vmul.f32 %v629, %v638
      %v642 = vmul.f32 %v630, %v638
      %v643 = vmul.f32 %v631, %v638
      %v644 = vmul.f32 %v632, %v638
      %v645 = vmul.f32 %v633, %v638
      %v646 = vmul.f32 %v634, %v638
      %v647 = vadd.f32 %v619, %v639
      %v648 = vadd.f32 %v620, %v640
      %v649 = vadd.f32 %v621, %v641
      %v650 = vadd.f32 %v622, %v642
      %v651 = vadd.f32 %v623, %v643
      %v652 = vadd.f32 %v624, %v644
      %v653 = vadd.f32 %v625, %v645
      %v654 = vadd.f32 %v626, %v646
      %v655 = vld [vmem:[%s567] sm:$0xff]
      %v656 = vld [vmem:[%s567 + $0x8] sm:$0xff]
      %v657 = vld [vmem:[%s567 + $0x18] sm:$0xff]
      %v658 = vld [vmem:[%s567 + $0x20] sm:$0xff]
      %v659 = vld [vmem:[%s567 + $0x30] sm:$0xff]
      %v660 = vld [vmem:[%s567 + $0x38] sm:$0xff]
      %v661 = vld [vmem:[%s567 + $0x48] sm:$0xff]
      %v662 = vld [vmem:[%s567 + $0x50] sm:$0xff]
      %v663 = vlaneseq
      %v664 = vshrl.u32 %v663, 7
      %v665 = vsub.s32 0, %v664
      %v666 = vrot.slane %v551, %v665
      %v667 = vmul.f32 %v655, %v666
      %v668 = vmul.f32 %v656, %v666
      %v669 = vmul.f32 %v657, %v666
      %v670 = vmul.f32 %v658, %v666
      %v671 = vmul.f32 %v659, %v666
      %v672 = vmul.f32 %v660, %v666
      %v673 = vmul.f32 %v661, %v666
      %v674 = vmul.f32 %v662, %v666
      %v675 = vadd.f32 %v647, %v667
      %v676 = vadd.f32 %v648, %v668
      %v677 = vadd.f32 %v649, %v669
      %v678 = vadd.f32 %v650, %v670
      %v679 = vadd.f32 %v651, %v671
      %v680 = vadd.f32 %v652, %v672
      %v681 = vadd.f32 %v653, %v673
      %v682 = vadd.f32 %v654, %v674
      %v683 = vld [vmem:[%s567 + $0x1] sm:$0xff]
      %v684 = vld [vmem:[%s567 + $0x9] sm:$0xff]
      %v685 = vld [vmem:[%s567 + $0x19] sm:$0xff]
      %v686 = vld [vmem:[%s567 + $0x21] sm:$0xff]
      %v687 = vld [vmem:[%s567 + $0x31] sm:$0xff]
      %v688 = vld [vmem:[%s567 + $0x39] sm:$0xff]
      %v689 = vld [vmem:[%s567 + $0x49] sm:$0xff]
      %v690 = vld [vmem:[%s567 + $0x51] sm:$0xff]
      %v691 = vlaneseq
      %v692 = vshrl.u32 %v691, 7
      %v693 = vsub.s32 1, %v692
      %v694 = vrot.slane %v551, %v693
      %v695 = vmul.f32 %v683, %v694
      %v696 = vmul.f32 %v684, %v694
      %v697 = vmul.f32 %v685, %v694
      %v698 = vmul.f32 %v686, %v694
      %v699 = vmul.f32 %v687, %v694
      %v700 = vmul.f32 %v688, %v694
      %v701 = vmul.f32 %v689, %v694
      %v702 = vmul.f32 %v690, %v694
      %v703 = vadd.f32 %v675, %v695
      %v704 = vadd.f32 %v676, %v696
      %v705 = vadd.f32 %v677, %v697
      %v706 = vadd.f32 %v678, %v698
      %v707 = vadd.f32 %v679, %v699
      %v708 = vadd.f32 %v680, %v700
      %v709 = vadd.f32 %v681, %v701
      %v710 = vadd.f32 %v682, %v702
      %v711 = vld [vmem:[%s567 + $0x2] sm:$0xff]
      %v712 = vld [vmem:[%s567 + $0xa] sm:$0xff]
      %v713 = vld [vmem:[%s567 + $0x1a] sm:$0xff]
      %v714 = vld [vmem:[%s567 + $0x22] sm:$0xff]
      %v715 = vld [vmem:[%s567 + $0x32] sm:$0xff]
      %v716 = vld [vmem:[%s567 + $0x3a] sm:$0xff]
      %v717 = vld [vmem:[%s567 + $0x4a] sm:$0xff]
      %v718 = vld [vmem:[%s567 + $0x52] sm:$0xff]
      %v719 = vlaneseq
      %v720 = vshrl.u32 %v719, 7
      %v721 = vsub.s32 2, %v720
      %v722 = vrot.slane %v551, %v721
      %v723 = vmul.f32 %v711, %v722
      %v724 = vmul.f32 %v712, %v722
      %v725 = vmul.f32 %v713, %v722
      %v726 = vmul.f32 %v714, %v722
      %v727 = vmul.f32 %v715, %v722
      %v728 = vmul.f32 %v716, %v722
      %v729 = vmul.f32 %v717, %v722
      %v730 = vmul.f32 %v718, %v722
      %v731 = vadd.f32 %v703, %v723
      %v732 = vadd.f32 %v704, %v724
      %v733 = vadd.f32 %v705, %v725
      %v734 = vadd.f32 %v706, %v726
      %v735 = vadd.f32 %v707, %v727
      %v736 = vadd.f32 %v708, %v728
      %v737 = vadd.f32 %v709, %v729
      %v738 = vadd.f32 %v710, %v730
      %s739 = scalar_lea.vmem [#allocation2], 48
      %v740 = vld [vmem:[%s739] sm:$0xff]
      %v741 = vld [vmem:[%s739 + $0x8] sm:$0xff]
      %v742 = vld [vmem:[%s739 + $0x18] sm:$0xff]
      %v743 = vld [vmem:[%s739 + $0x20] sm:$0xff]
      %v744 = vld [vmem:[%s739 + $0x30] sm:$0xff]
      %v745 = vld [vmem:[%s739 + $0x38] sm:$0xff]
      %v746 = vld [vmem:[%s739 + $0x48] sm:$0xff]
      %v747 = vld [vmem:[%s739 + $0x50] sm:$0xff]
      %v748 = vlaneseq
      %v749 = vshrl.u32 %v748, 7
      %v750 = vsub.s32 0, %v749
      %v751 = vrot.slane %v552, %v750
      %v752 = vmul.f32 %v740, %v751
      %v753 = vmul.f32 %v741, %v751
      %v754 = vmul.f32 %v742, %v751
      %v755 = vmul.f32 %v743, %v751
      %v756 = vmul.f32 %v744, %v751
      %v757 = vmul.f32 %v745, %v751
      %v758 = vmul.f32 %v746, %v751
      %v759 = vmul.f32 %v747, %v751
      %v760 = vadd.f32 %v731, %v752
      %v761 = vadd.f32 %v732, %v753
      %v762 = vadd.f32 %v733, %v754
      %v763 = vadd.f32 %v734, %v755
      %v764 = vadd.f32 %v735, %v756
      %v765 = vadd.f32 %v736, %v757
      %v766 = vadd.f32 %v737, %v758
      %v767 = vadd.f32 %v738, %v759
      %v768 = vld [vmem:[%s739 + $0x1] sm:$0xff]
      %v769 = vld [vmem:[%s739 + $0x9] sm:$0xff]
      %v770 = vld [vmem:[%s739 + $0x19] sm:$0xff]
      %v771 = vld [vmem:[%s739 + $0x21] sm:$0xff]
      %v772 = vld [vmem:[%s739 + $0x31] sm:$0xff]
      %v773 = vld [vmem:[%s739 + $0x39] sm:$0xff]
      %v774 = vld [vmem:[%s739 + $0x49] sm:$0xff]
      %v775 = vld [vmem:[%s739 + $0x51] sm:$0xff]
      %v776 = vlaneseq
      %v777 = vshrl.u32 %v776, 7
      %v778 = vsub.s32 1, %v777
      %v779 = vrot.slane %v552, %v778
      %v780 = vmul.f32 %v768, %v779
      %v781 = vmul.f32 %v769, %v779
      %v782 = vmul.f32 %v770, %v779
      %v783 = vmul.f32 %v771, %v779
      %v784 = vmul.f32 %v772, %v779
      %v785 = vmul.f32 %v773, %v779
      %v786 = vmul.f32 %v774, %v779
      %v787 = vmul.f32 %v775, %v779
      %v788 = vadd.f32 %v760, %v780
      %v789 = vadd.f32 %v761, %v781
      %v790 = vadd.f32 %v762, %v782
      %v791 = vadd.f32 %v763, %v783
      %v792 = vadd.f32 %v764, %v784
      %v793 = vadd.f32 %v765, %v785
      %v794 = vadd.f32 %v766, %v786
      %v795 = vadd.f32 %v767, %v787
      %v796 = vld [vmem:[%s739 + $0x2] sm:$0xff]
      %v797 = vld [vmem:[%s739 + $0xa] sm:$0xff]
      %v798 = vld [vmem:[%s739 + $0x1a] sm:$0xff]
      %v799 = vld [vmem:[%s739 + $0x22] sm:$0xff]
      %v800 = vld [vmem:[%s739 + $0x32] sm:$0xff]
      %v801 = vld [vmem:[%s739 + $0x3a] sm:$0xff]
      %v802 = vld [vmem:[%s739 + $0x4a] sm:$0xff]
      %v803 = vld [vmem:[%s739 + $0x52] sm:$0xff]
      %v804 = vlaneseq
      %v805 = vshrl.u32 %v804, 7
      %v806 = vsub.s32 2, %v805
      %v807 = vrot.slane %v552, %v806
      %v808 = vmul.f32 %v796, %v807
      %v809 = vmul.f32 %v797, %v807
      %v810 = vmul.f32 %v798, %v807
      %v811 = vmul.f32 %v799, %v807
      %v812 = vmul.f32 %v800, %v807
      %v813 = vmul.f32 %v801, %v807
      %v814 = vmul.f32 %v802, %v807
      %v815 = vmul.f32 %v803, %v807
      %v816 = vadd.f32 %v788, %v808
      %v817 = vadd.f32 %v789, %v809
      %v818 = vadd.f32 %v790, %v810
      %v819 = vadd.f32 %v791, %v811
      %v820 = vadd.f32 %v792, %v812
      %v821 = vadd.f32 %v793, %v813
      %v822 = vadd.f32 %v794, %v814
      %v823 = vadd.f32 %v795, %v815
      %v824 = vld [vmem:[%s4] sm:$0x1]
      %v826 = vlaneseq
      %v827 = vshrl.u32 %v826, 7
      %v828 = vsub.s32 0, %v827
      %v829 = vrot.slane %v824, %v828
      %v831 = vadd.f32 %v816, %v829
      %v832 = vadd.f32 %v817, %v829
      %v833 = vadd.f32 %v818, %v829
      %v834 = vadd.f32 %v819, %v829
      %v835 = vadd.f32 %v820, %v829
      %v836 = vadd.f32 %v821, %v829
      %v837 = vadd.f32 %v822, %v829
      %v838 = vadd.f32 %v823, %v829
      %v839 = vmax.f32 %v831, 0.0
      %v840 = vmax.f32 %v832, 0.0
      %v841 = vmax.f32 %v833, 0.0
      %v842 = vmax.f32 %v834, 0.0
      %v843 = vmax.f32 %v835, 0.0
      %v844 = vmax.f32 %v836, 0.0
      %v845 = vmax.f32 %v837, 0.0
      %v846 = vmax.f32 %v838, 0.0
      %v847 = vmin.f32 %v839, 6.0
      %v848 = vmin.f32 %v840, 6.0
      %v849 = vmin.f32 %v841, 6.0
      %v850 = vmin.f32 %v842, 6.0
      %v851 = vmin.f32 %v843, 6.0
      %v852 = vmin.f32 %v844, 6.0
      %v853 = vmin.f32 %v845, 6.0
      %v854 = vmin.f32 %v846, 6.0
      %v855 = vpack.c.bf16 %v848, %v847
      %v856 = vpack.c.bf16 %v850, %v849
      %v857 = vpack.c.bf16 %v852, %v851
      %v858 = vpack.c.bf16 %v854, %v853
      %v859 = vld [vmem:[%s5] sm:$0xf]
      %v860 = vld [vmem:[%s5 + $0x4] sm:$0xf]
      %v861 = vld [vmem:[%s5 + $0x8] sm:$0xf]
      %v862 = vld [vmem:[%s5 + $0xc] sm:$0xf]
      %v863 = vld [vmem:[%s5 + $0x10] sm:$0xf]
      %v864 = vld [vmem:[%s5 + $0x14] sm:$0xf]
      %v865 = vld [vmem:[%s5 + $0x18] sm:$0xf]
      %v866 = vld [vmem:[%s5 + $0x1c] sm:$0xf]
      %v867 = vld [vmem:[%s5 + $0x20] sm:$0xf]
      %v868 = vld [vmem:[%s5 + $0x24] sm:$0xf]
      %v869 = vld [vmem:[%s5 + $0x28] sm:$0xf]
      %v870 = vld [vmem:[%s5 + $0x2c] sm:$0xf]
      %v871 = vld [vmem:[%s5 + $0x30] sm:$0xf]
      %v872 = vld [vmem:[%s5 + $0x34] sm:$0xf]
      %v873 = vld [vmem:[%s5 + $0x38] sm:$0xf]
      %v874 = vld [vmem:[%s5 + $0x3c] sm:$0xf]
      %v875 = vld [vmem:[%s6] sm:$0x1]
      %v877 = vlaneseq
      %v878 = vshrl.u32 %v877, 7
      %v879 = vsub.s32 0, %v878
      %v880 = vrot.slane %v875, %v879
      %v898 = vunpack.c.l.b16 %v859
      %v899 = vunpack.c.l.b16 %v860
      %v900 = vunpack.c.l.b16 %v861
      %v901 = vunpack.c.l.b16 %v862
      %v902 = vunpack.c.l.b16 %v863
      %v903 = vunpack.c.l.b16 %v864
      %v904 = vunpack.c.l.b16 %v865
      %v905 = vunpack.c.l.b16 %v866
      %v906 = vunpack.c.l.b16 %v867
      %v907 = vunpack.c.l.b16 %v868
      %v908 = vunpack.c.l.b16 %v869
      %v909 = vunpack.c.l.b16 %v870
      %v910 = vunpack.c.l.b16 %v871
      %v911 = vunpack.c.l.b16 %v872
      %v912 = vunpack.c.l.b16 %v873
      %v913 = vunpack.c.l.b16 %v874
      %v914 = vpack.c.b16 %v899, %v898
      %v915 = vpack.c.b16 %v901, %v900
      %v916 = vpack.c.b16 %v903, %v902
      %v917 = vpack.c.b16 %v905, %v904
      %v918 = vpack.c.b16 %v907, %v906
      %v919 = vpack.c.b16 %v909, %v908
      %v920 = vpack.c.b16 %v911, %v910
      %v921 = vpack.c.b16 %v913, %v912
      %930 = vmatprep.subr.bf16.mxu0 0
      %931 = vmatpush1.bf16.msra.mxu0 %v914
      %932 = vmatprep.subr.bf16.mxu0 0
      %933 = vmatpush1.bf16.msra.mxu0 %v915
      %934 = vmatprep.subr.bf16.mxu0 0
      %935 = vmatpush1.bf16.msra.mxu0 %v916
      %936 = vmatprep.subr.bf16.mxu0 0
      %937 = vmatpush1.bf16.msra.mxu0 %v917
      %938 = vmatprep.subr.bf16.mxu0 0
      %939 = vmatpush1.bf16.msra.mxu0 %v918
      %940 = vmatprep.subr.bf16.mxu0 0
      %941 = vmatpush1.bf16.msra.mxu0 %v919
      %942 = vmatprep.subr.bf16.mxu0 0
      %943 = vmatpush1.bf16.msra.mxu0 %v920
      %944 = vmatprep.subr.bf16.mxu0 0
      %945 = vmatpush1.bf16.msra.mxu0 %v921
      %946 = vmatprep.subr.bf16.mxu0 0
      %947 = vmatpush1.bf16.msra.mxu0 0
      %948 = vmatprep.subr.bf16.mxu0 0
      %949 = vmatpush1.bf16.msra.mxu0 0
      %950 = vmatprep.subr.bf16.mxu0 0
      %951 = vmatpush1.bf16.msra.mxu0 0
      %952 = vmatprep.subr.bf16.mxu0 0
      %953 = vmatpush1.bf16.msra.mxu0 0
      %954 = vmatprep.subr.bf16.mxu0 0
      %955 = vmatpush1.bf16.msra.mxu0 0
      %956 = vmatprep.subr.bf16.mxu0 0
      %957 = vmatpush1.bf16.msra.mxu0 0
      %958 = vmatprep.subr.bf16.mxu0 0
      %959 = vmatpush1.bf16.msra.mxu0 0
      %960 = vmatprep.subr.bf16.mxu0 0
      %961 = vmatpush1.bf16.msra.mxu0 0
      %962 = vmatprep.mubr.bf16.mxu0 0
      %963 = vmatmul.mubr.bf16.gmra.mrb[0].mxu0 %v855
      %v964 = vpop.f32.mrb[0].mxu0
      %v965 = vadd.f32 %v880, %v964
      %v966 = vpop.f32.mrb[0].mxu0
      %v967 = vpop.f32.mrb[0].mxu0
      %v968 = vadd.f32 %v880, %v967
      %v969 = vpop.f32.mrb[0].mxu0
      %970 = vmatprep.mubr.bf16.mxu0 0
      %971 = vmatmul.mubr.bf16.gmra.mrb[0].mxu0 %v856
      %v972 = vpop.f32.mrb[0].mxu0
      %v973 = vadd.f32 %v880, %v972
      %v974 = vpop.f32.mrb[0].mxu0
      %v975 = vpop.f32.mrb[0].mxu0
      %v976 = vadd.f32 %v880, %v975
      %v977 = vpop.f32.mrb[0].mxu0
      %978 = vmatprep.mubr.bf16.mxu0 0
      %979 = vmatmul.mubr.bf16.gmra.mrb[0].mxu0 %v857
      %v980 = vpop.f32.mrb[0].mxu0
      %v981 = vadd.f32 %v880, %v980
      %v982 = vpop.f32.mrb[0].mxu0
      %v983 = vpop.f32.mrb[0].mxu0
      %v984 = vadd.f32 %v880, %v983
      %v985 = vpop.f32.mrb[0].mxu0
      %986 = vmatprep.mubr.bf16.mxu0 0
      %987 = vmatmul.mubr.bf16.gmra.mrb[0].mxu0 %v858
      %v988 = vpop.f32.mrb[0].mxu0
      %v989 = vadd.f32 %v880, %v988
      %v990 = vpop.f32.mrb[0].mxu0
      %v991 = vpop.f32.mrb[0].mxu0
      %v992 = vadd.f32 %v880, %v991
      %v993 = vpop.f32.mrb[0].mxu0
      %994 = vdwg.mxu0
      %v995 = vadd.f32 %v965, %v310
      %v996 = vadd.f32 %v968, %v311
      %v997 = vadd.f32 %v973, %v312
      %v998 = vadd.f32 %v976, %v313
      %v999 = vadd.f32 %v981, %v314
      %v1000 = vadd.f32 %v984, %v315
      %v1001 = vadd.f32 %v989, %v316
      %v1002 = vadd.f32 %v992, %v317
      %1003 = vst.msk [vmem:[%s302] sm:$0xff] %vm330, %v995
      %1004 = vst.msk [vmem:[%s302 + $0x8] sm:$0xff] %vm330, %v996
      %1005 = vst.msk [vmem:[%s302 + $0x10] sm:$0xff] %vm330, %v997
      %1006 = vst.msk [vmem:[%s302 + $0x18] sm:$0xff] %vm330, %v998
      %1007 = vst.msk [vmem:[%s302 + $0x20] sm:$0xff] %vm330, %v999
      %1008 = vst.msk [vmem:[%s302 + $0x28] sm:$0xff] %vm330, %v1000
      %1009 = vst.msk [vmem:[%s302 + $0x30] sm:$0xff] %vm330, %v1001
      %1010 = vst.msk [vmem:[%s302 + $0x38] sm:$0xff] %vm330, %v1002
      %s1011 = smul.u32 4, %s23
      %p1012 = scmp.lt.s32.totalorder %s22, 1
      %s1013 = scalar_select %p1012, %s22, 1
      %p1014 = scmp.lt.s32.totalorder %s1011, 15
      %s1015 = scalar_select %p1014, %s1011, 15
      %s1016 = smul.addr %s1015, 2
      %s1017 = smul.addr %s1013, 32
      %s1018 = sadd.s32 %s1016, %s1017
      %s1019 = smul.addr %s1018, 8
      %s1020 = scalar_lea.vmem %s7, %s1019
      // Predicated region
      $region49: #{tpu_custom_call.1} parent=47 // pred_check
        %p1021 = pneg %p202
      $region50: #{tpu_custom_call.1} parent=47 // pred_check_branch
        %1023 = sbr.rel (%p1021) target = $region52
      $region51: #{tpu_custom_call.1} parent=47 // pred_region
        %s1024 = smul.u32 4, %s23
      $region52: #{tpu_custom_call.1} parent=47 // pred_fallthru
        _
    $region48: #{tpu_custom_call.1} parent=5 // pred_fallthru
      _
    %p1025 = scmp.le.s32.totalorder 2, %s13
    // Predicated region
    $region53: #{tpu_custom_call.1} parent=5 // pred_check
      %p1026 = pneg %p1025
    $region54: #{tpu_custom_call.1} parent=5 // pred_check_branch
      %1028 = sbr.rel (%p1026) target = $region56
    $region55: #{tpu_custom_call.1} parent=5 // pred_region
      %s1029 = ssub.s32 %s13, 2
      // Predicated region
      $region57: #{tpu_custom_call.1} parent=55 // pred_check
        %p1030 = pneg %p208
      $region58: #{tpu_custom_call.1} parent=55 // pred_check_branch
        %1032 = sbr.rel (%p1030) target = $region60
      $region59: #{tpu_custom_call.1} parent=55 // pred_region
        %s1033 = smul.u32 4, %s25
        %p1034 = scmp.lt.s32.totalorder %s24, 1
        %s1035 = scalar_select %p1034, %s24, 1
        %p1036 = scmp.lt.s32.totalorder %s1033, 15
        %s1037 = scalar_select %p1036, %s1033, 15
        %s1038 = smul.addr %s1037, 2
        %s1039 = smul.addr %s1035, 32
        %s1040 = sadd.s32 %s1038, %s1039
        %s1041 = smul.addr %s1040, 8
        %s1042 = scalar_lea.vmem %s7, %s1041
      $region60: #{tpu_custom_call.1} parent=55 // pred_fallthru
        _
    $region56: #{tpu_custom_call.1} parent=5 // pred_fallthru
      _
  $region6: #{tpu_custom_call.1} parent=0 // loop_footer
    %s17 = sadd.s32 1, %s13
  $region7: #{tpu_custom_call.1} parent=0 // loop_footer_branch
    %12 = sbr.rel target = $region3
  $region8: #{tpu_custom_call.1} parent=0 // loop_exit
    _

</llo_original>
